<compile_context>
chip_gen: v6e
topology: v6e:2x2x1
jax: 0.10.0
libtpu: 0.0.40
codegen_flags: <defaults>
</compile_context>

<pallas_src>
import functools

import jax
import jax.numpy as jnp
from jax.experimental import pallas as pl
from jax.experimental.pallas import tpu as pltpu


def _topic_layer_kernel(x_ref, mask_ref, w1_ref, b1_ref, w2_ref, b2_ref,
                        wf_ref, bf_ref, tvec_ref, tw_ref, *, approx_recip):
    TB, S, E = x_ref.shape
    H = w2_ref.shape[1]

    x3 = x_ref[...]                              # (TB, S, E)
    x2 = x3.reshape(TB * S, E)                   # merge batch/seq -> big-M matmul

    # topic_layer: Linear(E, topic_dim) -> tanh -> Linear(topic_dim, H),
    # batched over TB as one large-M matmul (f32 accumulation on the MXU).
    h1 = jnp.tanh(
        jnp.dot(x2, w1_ref[...], preferred_element_type=jnp.float32)
        + b1_ref[...])                                                   # (TB*S, T) f32
    logits = (jnp.dot(h1.astype(w2_ref.dtype), w2_ref[...],
                      preferred_element_type=jnp.float32)
              + b2_ref[...])                                             # (TB*S, H) f32

    # Transpose BEFORE the softmax so all elementwise work / the reduce are lane-dense
    # over S (H is tiny). tw then lands directly in its (B, H, S) output layout.
    logits_hs = jnp.swapaxes(logits.reshape(TB, S, H), 1, 2)             # (TB, H, S)

    invalid = mask_ref[...] == 0.0                                       # (TB, 1, S)
    s = jnp.where(invalid, -10000.0, logits_hs)
    s = s - jnp.max(s, axis=-1, keepdims=True)
    e = jnp.exp(s)
    denom = jnp.sum(e, axis=-1, keepdims=True)
    p = e * pl.reciprocal(denom, approx=approx_recip)
    tw_hs = jnp.where(invalid, 0.0, p)                                   # (TB, H, S) f32

    # Lane-dense 2-D store (H % 8 == 0 -> layout no-op merge of TB and H).
    tw_ref[...] = tw_hs.reshape(TB * H, S).astype(tw_ref.dtype)

    # topic_vec = final(topic_weight @ news_embeddings); tw already (H, S) with S
    # contiguous so the batched contraction needs no extra transpose.
    tv = jnp.einsum("bhs,bse->bhe", tw_hs.astype(x3.dtype), x3,
                    preferred_element_type=jnp.float32)                  # (TB, H, E)
    tv2 = tv.reshape(TB * H, E)
    tvec_ref[...] = (jnp.dot(tv2.astype(wf_ref.dtype), wf_ref[...],
                             preferred_element_type=jnp.float32)
                     + bf_ref[...]).astype(tvec_ref.dtype)               # (TB*H, E)


def topic_layer_forward(news_embeddings, news_mask, params, *,
                        target_rows=256,            # rows (TB*S) fed to the MXU per step
                        min_grid_steps=2,           # 1 on v5e (single TC), >=2 on v6e/v7x
                        mxu_dtype=jnp.bfloat16,     # MXU-native; f32 for exact parity
                        out_dtype=jnp.float32,      # bf16 halves writeback if allowed
                        single_buffer_weights=True):
    B, S, E = news_embeddings.shape
    topic_dim = params["w1"].shape[1]
    H = params["w2"].shape[1]
    assert S % 8 == 0 and H % 8 == 0, "pad seq-len / head_num to multiples of 8"

    # ---- batch blocking ---------------------------------------------------------
    TB = max(1, min(B, target_rows // S))
    if min_grid_steps > 1 and pl.cdiv(B, TB) < min_grid_steps:
        TB = max(1, pl.cdiv(B, min_grid_steps))    # keep enough steps for megacore
    Bp = pl.cdiv(B, TB) * TB                       # pad batch so the grid divides evenly
    if Bp != B:
        pad = Bp - B
        news_embeddings = jnp.concatenate(
            [news_embeddings, jnp.zeros((pad, S, E), news_embeddings.dtype)], axis=0)
        news_mask = jnp.concatenate(
            [news_mask, jnp.zeros((pad, S), news_mask.dtype)], axis=0)
    grid = (Bp // TB,)

    x = news_embeddings.astype(mxu_dtype)
    # mask pre-broadcast to the post-transpose (B, 1, S) layout (lane-dense over S).
    mask_b1s = news_mask.reshape(Bp, 1, S).astype(jnp.float32)
    w1 = params["w1"].astype(mxu_dtype); b1 = params["b1"].astype(jnp.float32)
    w2 = params["w2"].astype(mxu_dtype); b2 = params["b2"].astype(jnp.float32)
    wf = params["wf"].astype(mxu_dtype); bf = params["bf"].astype(jnp.float32)

    # Exact reciprocal on the f32 parity path; EUP approx reciprocal otherwise.
    approx_recip = (jnp.dtype(mxu_dtype) != jnp.dtype(jnp.float32))
    kernel = functools.partial(_topic_layer_kernel, approx_recip=approx_recip)

    # ---- explicit VMEM budget (matters most on v7x's 64 MiB) ---------------------
    in_item = jnp.dtype(mxu_dtype).itemsize
    out_item = jnp.dtype(out_dtype).itemsize
    weight_bytes = (E * topic_dim + topic_dim + topic_dim * H + H + E * E + E) * in_item
    weight_bytes *= 1 if single_buffer_weights else 2
    io_bytes = 2 * (TB * S * E * in_item + TB * S * 4)            # double-buffered inputs
    io_bytes += 2 * (TB * H * E + TB * H * S) * out_item          # double-buffered outputs
    vmem_limit = int(min(64 << 20, max(32 << 20, 4 * (weight_bytes + io_bytes))))

    def _run(single_buffer):
        wkw = {"pipeline_mode": pl.Buffered(buffer_count=1)} if single_buffer else {}

        def const_spec(shape):
            return pl.BlockSpec(shape, lambda i: (0, 0), **wkw)

        # TODO(synk): at production sizes, pad S/E to multiples of 128 lanes (or fuse this
        # op into a larger kernel) so every vreg / MXU pass is lane-full and all output
        # stores are unmasked vst.
        return pl.pallas_call(
            kernel,
            out_shape=(jax.ShapeDtypeStruct((Bp * H, E), out_dtype),   # topic_vec slab
                       jax.ShapeDtypeStruct((Bp * H, S), out_dtype)),  # topic_weight slab
            grid_spec=pltpu.PrefetchScalarGridSpec(
                num_scalar_prefetch=0,
                grid=grid,
                in_specs=[
                    pl.BlockSpec((TB, S, E), lambda i: (i, 0, 0)),   # news_embeddings
                    pl.BlockSpec((TB, 1, S), lambda i: (i, 0, 0)),   # mask (valid=1.0)
                    const_spec((E, topic_dim)),                      # W1
                    const_spec((1, topic_dim)),                      # b1
                    const_spec((topic_dim, H)),                      # W2
                    const_spec((1, H)),                              # b2
                    const_spec((E, E)),                              # Wf (final)
                    const_spec((1, E)),                              # bf (final)
                ],
                out_specs=[
                    pl.BlockSpec((TB * H, E), lambda i: (i, 0)),     # topic_vec
                    pl.BlockSpec((TB * H, S), lambda i: (i, 0)),     # topic_weight
                ],
            ),
            compiler_params=pltpu.CompilerParams(
                dimension_semantics=("parallel",),
                vmem_limit_bytes=vmem_limit),
        )(x, mask_b1s, w1, b1, w2, b2, wf, bf)

    if single_buffer_weights:
        try:
            tvec2d, tw2d = _run(True)
        except Exception:
            # Narrow fallback: only the weight buffering differs, so any genuine
            # lowering/shape error re-raises from the retried call instead of being hidden.
            tvec2d, tw2d = _run(False)
    else:
        tvec2d, tw2d = _run(False)

    topic_vec = tvec2d.reshape(Bp, H, E)[:B]
    topic_weight = tw2d.reshape(Bp, H, S)[:B]
    return {"topic_vec": topic_vec, "topic_weight": topic_weight}


def reference_forward(news_embeddings, news_mask, params):
    """Pure-JAX f32 reference mirroring the PyTorch module ('base' variant)."""
    h1 = jnp.tanh(news_embeddings @ params["w1"] + params["b1"])
    logits = h1 @ params["w2"] + params["b2"]                        # (B, S, H)
    tw = jnp.swapaxes(logits, 1, 2)                                  # (B, H, S)
    mask = (news_mask == 0)[:, None, :]                              # (B, 1, S)
    s = jnp.where(mask, -10000.0, tw)
    p = jax.nn.softmax(s, axis=-1)
    tw = jnp.where(mask, 0.0, p)
    tvec = (tw @ news_embeddings) @ params["wf"] + params["bf"]
    return {"topic_vec": tvec, "topic_weight": tw}


if __name__ == "__main__":
    # Small, TPU-friendly shapes consistent with the module's forward; batch is large
    # enough to exercise the batch-blocked grid (2 steps of TB=4 at these sizes).
    B, S, E = 8, 8, 32               # batch, seq, embedding_dim
    head_num, head_dim = 8, 4
    topic_dim = head_num * head_dim  # 32

    key = jax.random.PRNGKey(0)
    k = jax.random.split(key, 8)

    params = {
        "w1": 0.1 * jax.random.normal(k[0], (E, topic_dim), jnp.float32),
        "b1": 0.1 * jax.random.normal(k[1], (1, topic_dim), jnp.float32),
        "w2": 0.1 * jax.random.normal(k[2], (topic_dim, head_num), jnp.float32),
        "b2": 0.1 * jax.random.normal(k[3], (1, head_num), jnp.float32),
        "wf": 0.1 * jax.random.normal(k[4], (E, E), jnp.float32),
        "bf": 0.1 * jax.random.normal(k[5], (1, E), jnp.float32),
    }

    news_embeddings = jax.random.normal(k[6], (B, S, E), jnp.float32)
    # mask: mix of fully-valid and padded sequences.
    lengths = jnp.array([8, 5, 8, 3, 7, 8, 1, 6])
    news_mask = (jnp.arange(S)[None, :] < lengths[:, None]).astype(jnp.float32)

    ref = reference_forward(news_embeddings, news_mask, params)

    # 1) Exact-parity f32 path (validates the kernel semantics).
    out_f32 = topic_layer_forward(news_embeddings, news_mask, params,
                                  mxu_dtype=jnp.float32, out_dtype=jnp.float32)
    jax.block_until_ready(out_f32)
    assert jnp.allclose(out_f32["topic_vec"], ref["topic_vec"], atol=1e-5, rtol=1e-5)
    assert jnp.allclose(out_f32["topic_weight"], ref["topic_weight"], atol=1e-5, rtol=1e-5)

    # 2) Default performance path: bf16 MXU inputs / bf16 outputs, relaxed tolerance.
    out_bf16 = topic_layer_forward(news_embeddings, news_mask, params,
                                   mxu_dtype=jnp.bfloat16, out_dtype=jnp.bfloat16)
    jax.block_until_ready(out_bf16)
    assert jnp.allclose(out_bf16["topic_vec"].astype(jnp.float32),
                        ref["topic_vec"], atol=3e-2, rtol=3e-2)
    assert jnp.allclose(out_bf16["topic_weight"].astype(jnp.float32),
                        ref["topic_weight"], atol=3e-2, rtol=3e-2)

    print("KERNEL_OK")
</pallas_src>

<mosaic_0001>
module attributes {stable_mosaic.version = 11 : i64} {
  func.func @_topic_layer_kernel(%arg0: i32, %arg1: memref<4x8x32xf32, #tpu.memory_space<vmem>>, %arg2: memref<4x1x8xf32, #tpu.memory_space<vmem>>, %arg3: memref<32x32xf32, #tpu.memory_space<vmem>>, %arg4: memref<1x32xf32, #tpu.memory_space<vmem>>, %arg5: memref<32x8xf32, #tpu.memory_space<vmem>>, %arg6: memref<1x8xf32, #tpu.memory_space<vmem>>, %arg7: memref<32x32xf32, #tpu.memory_space<vmem>>, %arg8: memref<1x32xf32, #tpu.memory_space<vmem>>, %arg9: memref<32x32xf32, #tpu.memory_space<vmem>>, %arg10: memref<32x8xf32, #tpu.memory_space<vmem>>) attributes {dimension_semantics = [#tpu.dimension_semantics<parallel>], iteration_bounds = array<i64: 2>, scalar_prefetch = 0 : i64, scratch_operands = 0 : i64, tpu.core_type = #tpu.core_type<tc>, window_params = [{transform_indices = @transform_0, window_bounds = array<i64: 4, 8, 32>}, {transform_indices = @transform_1, window_bounds = array<i64: 4, 1, 8>}, {pipeline_mode = #tpu.pipeline_mode<synchronous>, transform_indices = @transform_2, window_bounds = array<i64: 32, 32>}, {pipeline_mode = #tpu.pipeline_mode<synchronous>, transform_indices = @transform_3, window_bounds = array<i64: 1, 32>}, {pipeline_mode = #tpu.pipeline_mode<synchronous>, transform_indices = @transform_4, window_bounds = array<i64: 32, 8>}, {pipeline_mode = #tpu.pipeline_mode<synchronous>, transform_indices = @transform_5, window_bounds = array<i64: 1, 8>}, {pipeline_mode = #tpu.pipeline_mode<synchronous>, transform_indices = @transform_6, window_bounds = array<i64: 32, 32>}, {pipeline_mode = #tpu.pipeline_mode<synchronous>, transform_indices = @transform_7, window_bounds = array<i64: 1, 32>}, {transform_indices = @transform_8, window_bounds = array<i64: 32, 32>}, {transform_indices = @transform_9, window_bounds = array<i64: 32, 8>}]} {
    %c0 = arith.constant 0 : index
    %c0_0 = arith.constant 0 : index
    %c0_1 = arith.constant 0 : index
    %0 = vector.load %arg1[%c0, %c0_0, %c0_1] : memref<4x8x32xf32, #tpu.memory_space<vmem>>, vector<4x8x32xf32>
    %1 = vector.shape_cast %0 : vector<4x8x32xf32> to vector<32x32xf32>
    %c0_2 = arith.constant 0 : index
    %c0_3 = arith.constant 0 : index
    %2 = vector.load %arg3[%c0_2, %c0_3] : memref<32x32xf32, #tpu.memory_space<vmem>>, vector<32x32xf32>
    %cst = arith.constant dense<0.000000e+00> : vector<32x32xf32>
    %3 = tpu.matmul %1, %2, %cst {dimension_numbers = #tpu.dot_dimension_numbers<[1], [0], [0], [1], [0, 0, 1, 1], [], []>} : vector<32x32xf32>, vector<32x32xf32>, vector<32x32xf32> -> vector<32x32xf32>
    %c0_4 = arith.constant 0 : index
    %c0_5 = arith.constant 0 : index
    %4 = vector.load %arg4[%c0_4, %c0_5] : memref<1x32xf32, #tpu.memory_space<vmem>>, vector<1x32xf32>
    %5 = vector.broadcast %4 : vector<1x32xf32> to vector<32x32xf32>
    %6 = arith.addf %3, %5 : vector<32x32xf32>
    %7 = math.tanh %6 : vector<32x32xf32>
    %c0_6 = arith.constant 0 : index
    %c0_7 = arith.constant 0 : index
    %8 = vector.load %arg5[%c0_6, %c0_7] : memref<32x8xf32, #tpu.memory_space<vmem>>, vector<32x8xf32>
    %cst_8 = arith.constant dense<0.000000e+00> : vector<32x8xf32>
    %9 = tpu.matmul %7, %8, %cst_8 {dimension_numbers = #tpu.dot_dimension_numbers<[1], [0], [0], [1], [0, 0, 1, 1], [], []>} : vector<32x32xf32>, vector<32x8xf32>, vector<32x8xf32> -> vector<32x8xf32>
    %c0_9 = arith.constant 0 : index
    %c0_10 = arith.constant 0 : index
    %10 = vector.load %arg6[%c0_9, %c0_10] : memref<1x8xf32, #tpu.memory_space<vmem>>, vector<1x8xf32>
    %11 = vector.broadcast %10 : vector<1x8xf32> to vector<32x8xf32>
    %12 = arith.addf %9, %11 : vector<32x8xf32>
    %13 = vector.shape_cast %12 : vector<32x8xf32> to vector<4x8x8xf32>
    %14 = tpu.transpose %13, [0, 2, 1] : vector<4x8x8xf32> -> vector<4x8x8xf32>
    %c0_11 = arith.constant 0 : index
    %c0_12 = arith.constant 0 : index
    %c0_13 = arith.constant 0 : index
    %15 = vector.load %arg2[%c0_11, %c0_12, %c0_13] : memref<4x1x8xf32, #tpu.memory_space<vmem>>, vector<4x1x8xf32>
    %cst_14 = arith.constant 0.000000e+00 : f32
    %16 = vector.broadcast %cst_14 : f32 to vector<4x1x8xf32>
    %17 = arith.cmpf oeq, %15, %16 : vector<4x1x8xf32>
    %cst_15 = arith.constant -1.000000e+04 : f32
    %18 = vector.shape_cast %17 : vector<4x1x8xi1> to vector<4x1x8xi1>
    %19 = vector.broadcast %18 : vector<4x1x8xi1> to vector<4x8x8xi1>
    %20 = vector.broadcast %cst_15 : f32 to vector<4x8x8xf32>
    %21 = arith.select %19, %20, %14 : vector<4x8x8xi1>, vector<4x8x8xf32>
    %cst_16 = arith.constant dense<0xFF800000> : vector<4x8xf32>
    %22 = vector.multi_reduction <maximumf>, %21, %cst_16 [2] : vector<4x8x8xf32> to vector<4x8xf32>
    %23 = vector.shape_cast %22 : vector<4x8xf32> to vector<4x8x1xf32>
    %24 = vector.broadcast %23 : vector<4x8x1xf32> to vector<4x8x8xf32>
    %25 = arith.subf %21, %24 : vector<4x8x8xf32>
    %26 = math.exp %25 : vector<4x8x8xf32>
    %cst_17 = arith.constant dense<0.000000e+00> : vector<4x8xf32>
    %27 = vector.multi_reduction <add>, %26, %cst_17 [2] : vector<4x8x8xf32> to vector<4x8xf32>
    %28 = vector.shape_cast %27 : vector<4x8xf32> to vector<4x8x1xf32>
    %29 = tpu.reciprocal %28 : vector<4x8x1xf32> -> vector<4x8x1xf32>
    %30 = vector.broadcast %29 : vector<4x8x1xf32> to vector<4x8x8xf32>
    %31 = arith.mulf %26, %30 : vector<4x8x8xf32>
    %cst_18 = arith.constant 0.000000e+00 : f32
    %32 = vector.shape_cast %17 : vector<4x1x8xi1> to vector<4x1x8xi1>
    %33 = vector.broadcast %32 : vector<4x1x8xi1> to vector<4x8x8xi1>
    %34 = vector.broadcast %cst_18 : f32 to vector<4x8x8xf32>
    %35 = arith.select %33, %34, %31 : vector<4x8x8xi1>, vector<4x8x8xf32>
    %36 = vector.shape_cast %35 : vector<4x8x8xf32> to vector<32x8xf32>
    %c0_19 = arith.constant 0 : index
    %c0_20 = arith.constant 0 : index
    %37 = vector.load %arg10[%c0_19, %c0_20] : memref<32x8xf32, #tpu.memory_space<vmem>>, vector<32x8xf32>
    tpu.vector_store %arg10[%c0_19, %c0_20], %36 {strides = array<i32>} : memref<32x8xf32, #tpu.memory_space<vmem>>, vector<32x8xf32>,
    "tpu.trace_start"() <{level = 10 : i32, message = "bhs,bse->bhe"}> : () -> ()
    %cst_21 = arith.constant dense<0.000000e+00> : vector<4x8x32xf32>
    %38 = tpu.matmul %35, %0, %cst_21 {dimension_numbers = #tpu.dot_dimension_numbers<[2], [1], [1], [2], [0, 0, 0, 1, 1, 2], [0], [0]>} : vector<4x8x8xf32>, vector<4x8x32xf32>, vector<4x8x32xf32> -> vector<4x8x32xf32>
    "tpu.trace_stop"() : () -> ()
    %39 = vector.shape_cast %38 : vector<4x8x32xf32> to vector<32x32xf32>
    %c0_22 = arith.constant 0 : index
    %c0_23 = arith.constant 0 : index
    %40 = vector.load %arg7[%c0_22, %c0_23] : memref<32x32xf32, #tpu.memory_space<vmem>>, vector<32x32xf32>
    %cst_24 = arith.constant dense<0.000000e+00> : vector<32x32xf32>
    %41 = tpu.matmul %39, %40, %cst_24 {dimension_numbers = #tpu.dot_dimension_numbers<[1], [0], [0], [1], [0, 0, 1, 1], [], []>} : vector<32x32xf32>, vector<32x32xf32>, vector<32x32xf32> -> vector<32x32xf32>
    %c0_25 = arith.constant 0 : index
    %c0_26 = arith.constant 0 : index
    %42 = vector.load %arg8[%c0_25, %c0_26] : memref<1x32xf32, #tpu.memory_space<vmem>>, vector<1x32xf32>
    %43 = vector.broadcast %42 : vector<1x32xf32> to vector<32x32xf32>
    %44 = arith.addf %41, %43 : vector<32x32xf32>
    %c0_27 = arith.constant 0 : index
    %c0_28 = arith.constant 0 : index
    %45 = vector.load %arg9[%c0_27, %c0_28] : memref<32x32xf32, #tpu.memory_space<vmem>>, vector<32x32xf32>
    tpu.vector_store %arg9[%c0_27, %c0_28], %44 {strides = array<i32>} : memref<32x32xf32, #tpu.memory_space<vmem>>, vector<32x32xf32>,
    return
  }
  func.func @transform_0(%arg0: i32) -> (i32, i32, i32) {
    %c0_i32 = arith.constant 0 : i32
    %c0_i32_0 = arith.constant 0 : i32
    %c0_i32_1 = arith.constant 0 : i32
    return %arg0, %c0_i32, %c0_i32_0 : i32, i32, i32
  }
  func.func @transform_1(%arg0: i32) -> (i32, i32, i32) {
    %c0_i32 = arith.constant 0 : i32
    %c0_i32_0 = arith.constant 0 : i32
    %c0_i32_1 = arith.constant 0 : i32
    return %arg0, %c0_i32, %c0_i32_0 : i32, i32, i32
  }
  func.func @transform_2(%arg0: i32) -> (i32, i32) {
    %c0_i32 = arith.constant 0 : i32
    %c0_i32_0 = arith.constant 0 : i32
    %c0_i32_1 = arith.constant 0 : i32
    return %c0_i32, %c0_i32_0 : i32, i32
  }
  func.func @transform_3(%arg0: i32) -> (i32, i32) {
    %c0_i32 = arith.constant 0 : i32
    %c0_i32_0 = arith.constant 0 : i32
    %c0_i32_1 = arith.constant 0 : i32
    return %c0_i32, %c0_i32_0 : i32, i32
  }
  func.func @transform_4(%arg0: i32) -> (i32, i32) {
    %c0_i32 = arith.constant 0 : i32
    %c0_i32_0 = arith.constant 0 : i32
    %c0_i32_1 = arith.constant 0 : i32
    return %c0_i32, %c0_i32_0 : i32, i32
  }
  func.func @transform_5(%arg0: i32) -> (i32, i32) {
    %c0_i32 = arith.constant 0 : i32
    %c0_i32_0 = arith.constant 0 : i32
    %c0_i32_1 = arith.constant 0 : i32
    return %c0_i32, %c0_i32_0 : i32, i32
  }
  func.func @transform_6(%arg0: i32) -> (i32, i32) {
    %c0_i32 = arith.constant 0 : i32
    %c0_i32_0 = arith.constant 0 : i32
    %c0_i32_1 = arith.constant 0 : i32
    return %c0_i32, %c0_i32_0 : i32, i32
  }
  func.func @transform_7(%arg0: i32) -> (i32, i32) {
    %c0_i32 = arith.constant 0 : i32
    %c0_i32_0 = arith.constant 0 : i32
    %c0_i32_1 = arith.constant 0 : i32
    return %c0_i32, %c0_i32_0 : i32, i32
  }
  func.func @transform_8(%arg0: i32) -> (i32, i32) {
    %c0_i32 = arith.constant 0 : i32
    %c0_i32_0 = arith.constant 0 : i32
    return %arg0, %c0_i32 : i32, i32
  }
  func.func @transform_9(%arg0: i32) -> (i32, i32) {
    %c0_i32 = arith.constant 0 : i32
    %c0_i32_0 = arith.constant 0 : i32
    return %arg0, %c0_i32 : i32, i32
  }
}

module attributes {stable_mosaic.version = 11 : i64} {
  func.func @_topic_layer_kernel(%arg0: i32, %arg1: memref<4x8x32xf32, #tpu.memory_space<vmem>>, %arg2: memref<4x1x8xf32, #tpu.memory_space<vmem>>, %arg3: memref<32x32xf32, #tpu.memory_space<vmem>>, %arg4: memref<1x32xf32, #tpu.memory_space<vmem>>, %arg5: memref<32x8xf32, #tpu.memory_space<vmem>>, %arg6: memref<1x8xf32, #tpu.memory_space<vmem>>, %arg7: memref<32x32xf32, #tpu.memory_space<vmem>>, %arg8: memref<1x32xf32, #tpu.memory_space<vmem>>, %arg9: memref<32x32xf32, #tpu.memory_space<vmem>>, %arg10: memref<32x8xf32, #tpu.memory_space<vmem>>) attributes {dimension_semantics = [#tpu.dimension_semantics<parallel>], iteration_bounds = array<i64: 2>, scalar_prefetch = 0 : i64, scratch_operands = 0 : i64, tpu.core_type = #tpu.core_type<tc>, window_params = [{transform_indices = @transform_0, window_bounds = array<i64: 4, 8, 32>}, {transform_indices = @transform_1, window_bounds = array<i64: 4, 1, 8>}, {pipeline_mode = #tpu.pipeline_mode<synchronous>, transform_indices = @transform_2, window_bounds = array<i64: 32, 32>}, {pipeline_mode = #tpu.pipeline_mode<synchronous>, transform_indices = @transform_3, window_bounds = array<i64: 1, 32>}, {pipeline_mode = #tpu.pipeline_mode<synchronous>, transform_indices = @transform_4, window_bounds = array<i64: 32, 8>}, {pipeline_mode = #tpu.pipeline_mode<synchronous>, transform_indices = @transform_5, window_bounds = array<i64: 1, 8>}, {pipeline_mode = #tpu.pipeline_mode<synchronous>, transform_indices = @transform_6, window_bounds = array<i64: 32, 32>}, {pipeline_mode = #tpu.pipeline_mode<synchronous>, transform_indices = @transform_7, window_bounds = array<i64: 1, 32>}, {transform_indices = @transform_8, window_bounds = array<i64: 32, 32>}, {transform_indices = @transform_9, window_bounds = array<i64: 32, 8>}]} {
    %c0 = arith.constant 0 : index
    %c0_0 = arith.constant 0 : index
    %c0_1 = arith.constant 0 : index
    %0 = vector.load %arg1[%c0, %c0_0, %c0_1] : memref<4x8x32xf32, #tpu.memory_space<vmem>>, vector<4x8x32xf32>
    %1 = vector.shape_cast %0 : vector<4x8x32xf32> to vector<32x32xf32>
    %c0_2 = arith.constant 0 : index
    %c0_3 = arith.constant 0 : index
    %2 = vector.load %arg3[%c0_2, %c0_3] : memref<32x32xf32, #tpu.memory_space<vmem>>, vector<32x32xf32>
    %cst = arith.constant dense<0.000000e+00> : vector<32x32xf32>
    %3 = tpu.matmul %1, %2, %cst {dimension_numbers = #tpu.dot_dimension_numbers<[1], [0], [0], [1], [0, 0, 1, 1], [], []>} : vector<32x32xf32>, vector<32x32xf32>, vector<32x32xf32> -> vector<32x32xf32>
    %c0_4 = arith.constant 0 : index
    %c0_5 = arith.constant 0 : index
    %4 = vector.load %arg4[%c0_4, %c0_5] : memref<1x32xf32, #tpu.memory_space<vmem>>, vector<1x32xf32>
    %5 = vector.broadcast %4 : vector<1x32xf32> to vector<32x32xf32>
    %6 = arith.addf %3, %5 : vector<32x32xf32>
    %7 = math.tanh %6 : vector<32x32xf32>
    %c0_6 = arith.constant 0 : index
    %c0_7 = arith.constant 0 : index
    %8 = vector.load %arg5[%c0_6, %c0_7] : memref<32x8xf32, #tpu.memory_space<vmem>>, vector<32x8xf32>
    %cst_8 = arith.constant dense<0.000000e+00> : vector<32x8xf32>
    %9 = tpu.matmul %7, %8, %cst_8 {dimension_numbers = #tpu.dot_dimension_numbers<[1], [0], [0], [1], [0, 0, 1, 1], [], []>} : vector<32x32xf32>, vector<32x8xf32>, vector<32x8xf32> -> vector<32x8xf32>
    %c0_9 = arith.constant 0 : index
    %c0_10 = arith.constant 0 : index
    %10 = vector.load %arg6[%c0_9, %c0_10] : memref<1x8xf32, #tpu.memory_space<vmem>>, vector<1x8xf32>
    %11 = vector.broadcast %10 : vector<1x8xf32> to vector<32x8xf32>
    %12 = arith.addf %9, %11 : vector<32x8xf32>
    %13 = vector.shape_cast %12 : vector<32x8xf32> to vector<4x8x8xf32>
    %14 = tpu.transpose %13, [0, 2, 1] : vector<4x8x8xf32> -> vector<4x8x8xf32>
    %c0_11 = arith.constant 0 : index
    %c0_12 = arith.constant 0 : index
    %c0_13 = arith.constant 0 : index
    %15 = vector.load %arg2[%c0_11, %c0_12, %c0_13] : memref<4x1x8xf32, #tpu.memory_space<vmem>>, vector<4x1x8xf32>
    %cst_14 = arith.constant 0.000000e+00 : f32
    %16 = vector.broadcast %cst_14 : f32 to vector<4x1x8xf32>
    %17 = arith.cmpf oeq, %15, %16 : vector<4x1x8xf32>
    %cst_15 = arith.constant -1.000000e+04 : f32
    %18 = vector.shape_cast %17 : vector<4x1x8xi1> to vector<4x1x8xi1>
    %19 = vector.broadcast %18 : vector<4x1x8xi1> to vector<4x8x8xi1>
    %20 = vector.broadcast %cst_15 : f32 to vector<4x8x8xf32>
    %21 = arith.select %19, %20, %14 : vector<4x8x8xi1>, vector<4x8x8xf32>
    %cst_16 = arith.constant dense<0xFF800000> : vector<4x8xf32>
    %22 = vector.multi_reduction <maximumf>, %21, %cst_16 [2] : vector<4x8x8xf32> to vector<4x8xf32>
    %23 = vector.shape_cast %22 : vector<4x8xf32> to vector<4x8x1xf32>
    %24 = vector.broadcast %23 : vector<4x8x1xf32> to vector<4x8x8xf32>
    %25 = arith.subf %21, %24 : vector<4x8x8xf32>
    %26 = math.exp %25 : vector<4x8x8xf32>
    %cst_17 = arith.constant dense<0.000000e+00> : vector<4x8xf32>
    %27 = vector.multi_reduction <add>, %26, %cst_17 [2] : vector<4x8x8xf32> to vector<4x8xf32>
    %28 = vector.shape_cast %27 : vector<4x8xf32> to vector<4x8x1xf32>
    %29 = tpu.reciprocal %28 : vector<4x8x1xf32> -> vector<4x8x1xf32>
    %30 = vector.broadcast %29 : vector<4x8x1xf32> to vector<4x8x8xf32>
    %31 = arith.mulf %26, %30 : vector<4x8x8xf32>
    %cst_18 = arith.constant 0.000000e+00 : f32
    %32 = vector.shape_cast %17 : vector<4x1x8xi1> to vector<4x1x8xi1>
    %33 = vector.broadcast %32 : vector<4x1x8xi1> to vector<4x8x8xi1>
    %34 = vector.broadcast %cst_18 : f32 to vector<4x8x8xf32>
    %35 = arith.select %33, %34, %31 : vector<4x8x8xi1>, vector<4x8x8xf32>
    %36 = vector.shape_cast %35 : vector<4x8x8xf32> to vector<32x8xf32>
    %c0_19 = arith.constant 0 : index
    %c0_20 = arith.constant 0 : index
    %37 = vector.load %arg10[%c0_19, %c0_20] : memref<32x8xf32, #tpu.memory_space<vmem>>, vector<32x8xf32>
    tpu.vector_store %arg10[%c0_19, %c0_20], %36 {strides = array<i32>} : memref<32x8xf32, #tpu.memory_space<vmem>>, vector<32x8xf32>,
    "tpu.trace_start"() <{level = 10 : i32, message = "bhs,bse->bhe"}> : () -> ()
    %cst_21 = arith.constant dense<0.000000e+00> : vector<4x8x32xf32>
    %38 = tpu.matmul %35, %0, %cst_21 {dimension_numbers = #tpu.dot_dimension_numbers<[2], [1], [1], [2], [0, 0, 0, 1, 1, 2], [0], [0]>} : vector<4x8x8xf32>, vector<4x8x32xf32>, vector<4x8x32xf32> -> vector<4x8x32xf32>
    "tpu.trace_stop"() : () -> ()
    %39 = vector.shape_cast %38 : vector<4x8x32xf32> to vector<32x32xf32>
    %c0_22 = arith.constant 0 : index
    %c0_23 = arith.constant 0 : index
    %40 = vector.load %arg7[%c0_22, %c0_23] : memref<32x32xf32, #tpu.memory_space<vmem>>, vector<32x32xf32>
    %cst_24 = arith.constant dense<0.000000e+00> : vector<32x32xf32>
    %41 = tpu.matmul %39, %40, %cst_24 {dimension_numbers = #tpu.dot_dimension_numbers<[1], [0], [0], [1], [0, 0, 1, 1], [], []>} : vector<32x32xf32>, vector<32x32xf32>, vector<32x32xf32> -> vector<32x32xf32>
    %c0_25 = arith.constant 0 : index
    %c0_26 = arith.constant 0 : index
    %42 = vector.load %arg8[%c0_25, %c0_26] : memref<1x32xf32, #tpu.memory_space<vmem>>, vector<1x32xf32>
    %43 = vector.broadcast %42 : vector<1x32xf32> to vector<32x32xf32>
    %44 = arith.addf %41, %43 : vector<32x32xf32>
    %c0_27 = arith.constant 0 : index
    %c0_28 = arith.constant 0 : index
    %45 = vector.load %arg9[%c0_27, %c0_28] : memref<32x32xf32, #tpu.memory_space<vmem>>, vector<32x32xf32>
    tpu.vector_store %arg9[%c0_27, %c0_28], %44 {strides = array<i32>} : memref<32x32xf32, #tpu.memory_space<vmem>>, vector<32x32xf32>,
    return
  }
  func.func @transform_0(%arg0: i32) -> (i32, i32, i32) {
    %c0_i32 = arith.constant 0 : i32
    %c0_i32_0 = arith.constant 0 : i32
    %c0_i32_1 = arith.constant 0 : i32
    return %arg0, %c0_i32, %c0_i32_0 : i32, i32, i32
  }
  func.func @transform_1(%arg0: i32) -> (i32, i32, i32) {
    %c0_i32 = arith.constant 0 : i32
    %c0_i32_0 = arith.constant 0 : i32
    %c0_i32_1 = arith.constant 0 : i32
    return %arg0, %c0_i32, %c0_i32_0 : i32, i32, i32
  }
  func.func @transform_2(%arg0: i32) -> (i32, i32) {
    %c0_i32 = arith.constant 0 : i32
    %c0_i32_0 = arith.constant 0 : i32
    %c0_i32_1 = arith.constant 0 : i32
    return %c0_i32, %c0_i32_0 : i32, i32
  }
  func.func @transform_3(%arg0: i32) -> (i32, i32) {
    %c0_i32 = arith.constant 0 : i32
    %c0_i32_0 = arith.constant 0 : i32
    %c0_i32_1 = arith.constant 0 : i32
    return %c0_i32, %c0_i32_0 : i32, i32
  }
  func.func @transform_4(%arg0: i32) -> (i32, i32) {
    %c0_i32 = arith.constant 0 : i32
    %c0_i32_0 = arith.constant 0 : i32
    %c0_i32_1 = arith.constant 0 : i32
    return %c0_i32, %c0_i32_0 : i32, i32
  }
  func.func @transform_5(%arg0: i32) -> (i32, i32) {
    %c0_i32 = arith.constant 0 : i32
    %c0_i32_0 = arith.constant 0 : i32
    %c0_i32_1 = arith.constant 0 : i32
    return %c0_i32, %c0_i32_0 : i32, i32
  }
  func.func @transform_6(%arg0: i32) -> (i32, i32) {
    %c0_i32 = arith.constant 0 : i32
    %c0_i32_0 = arith.constant 0 : i32
    %c0_i32_1 = arith.constant 0 : i32
    return %c0_i32, %c0_i32_0 : i32, i32
  }
  func.func @transform_7(%arg0: i32) -> (i32, i32) {
    %c0_i32 = arith.constant 0 : i32
    %c0_i32_0 = arith.constant 0 : i32
    %c0_i32_1 = arith.constant 0 : i32
    return %c0_i32, %c0_i32_0 : i32, i32
  }
  func.func @transform_8(%arg0: i32) -> (i32, i32) {
    %c0_i32 = arith.constant 0 : i32
    %c0_i32_0 = arith.constant 0 : i32
    return %arg0, %c0_i32 : i32, i32
  }
  func.func @transform_9(%arg0: i32) -> (i32, i32) {
    %c0_i32 = arith.constant 0 : i32
    %c0_i32_0 = arith.constant 0 : i32
    return %arg0, %c0_i32 : i32, i32
  }
}

</mosaic_0001>

<llo_original>
// kernel: tpu_custom_call.1
$region0: #{tpu_custom_call.1}
  #allocation0 [shape = 'u32[]', space=smem, size = 0x4, offset = 0x4, fixed_abs, tag = 'smem constant byte address 0x4 - core index']
  #allocation1 [shape = 'u32[144,128]{1,0:T(1,128)}', space=vmem, size = 0x12000, scoped, tag = 'internal scratch']
  %s0 = inlined_call_operand.hbm [shape: f32[8,8,32], index: 0, kind: input, shape index: {}]
  %s1 = inlined_call_operand.vmem [shape: f32[8,1,8], index: 1, kind: input, shape index: {}]
  %s2 = inlined_call_operand.vmem [shape: f32[32,32], index: 2, kind: input, shape index: {}]
  %s3 = inlined_call_operand.vmem [shape: f32[1,32], index: 3, kind: input, shape index: {}]
  %s4 = inlined_call_operand.vmem [shape: f32[32,8], index: 4, kind: input, shape index: {}]
  %s5 = inlined_call_operand.vmem [shape: f32[1,8], index: 5, kind: input, shape index: {}]
  %s6 = inlined_call_operand.hbm [shape: f32[32,32], index: 6, kind: input, shape index: {}]
  %s7 = inlined_call_operand.vmem [shape: f32[1,32], index: 7, kind: input, shape index: {}]
  %s8 = inlined_call_operand.vmem [shape: f32[64,32], index: 8, kind: output, shape index: {0}]
  %s9 = inlined_call_operand.vmem [shape: f32[64,8], index: 9, kind: output, shape index: {1}]
  %10 = xla_tuple %s8, %s9
  %s11 = sld [smem:[#allocation0]]
  $region81: #{tpu_custom_call.1} parent=0
    _
  %s13 = ssub.s32 1, %s11
  %s14 = scalar_select 0, %s13, %s11
  $region1: #{tpu_custom_call.1} parent=0
    #allocation2 [shape = 'u8[32768]{0}', space=vmem, size = 0x8000, scoped, tag = 'input window, operand 0']
    #allocation3 [shape = 's32[2]{0}', space=sflag, size = 0x8, scoped, tag = 'scoped memory for tpu_custom_call.1']
    #allocation4 [shape = 'u8[16384]{0}', space=vmem, size = 0x4000, scoped, tag = 'input window, operand 6, single buffered']
    #allocation5 [shape = 's32[1]{0}', space=sflag, size = 0x4, scoped, tag = 'scoped memory for tpu_custom_call.1']
    %15 = vsyncpa [#allocation3], 0
    %s16 = scalar_lea.sflag [#allocation3], 1
    %17 = vsyncpa %s16, 0
    %18 = vsyncpa [#allocation5], 0
    loop: start=0, step=1, limit=4
    $region2: #{tpu_custom_call.1} parent=1 // loop_pre_header
      _
    $region3: #{tpu_custom_call.1} parent=1 // loop_header
      %s20 = sphi 0, %s24
      %p21 = scmp.ge.s32.totalorder %s20, 4
      %s30 = sphi 0, %s32
      %s33 = sphi 0, %s30
      %s34 = sphi 0, %s33
      %s50 = sphi 0, %s34
      %s56 = sphi 0, %s58
      %s59 = sphi 0, %s56
      %s60 = sphi 0, %s59
      %s76 = sphi 0, %s60
      %s80 = sphi 0, %s80
      %s82 = sphi 0, %s80
      %s83 = sphi 0, %s82
      %s97 = sphi 0, %s83
      %s101 = sphi 0, %s101
      %s103 = sphi 0, %s101
      %s104 = sphi 0, %s103
      %s118 = sphi 0, %s104
      %s122 = sphi 0, %s122
      %s124 = sphi 0, %s122
      %s125 = sphi 0, %s124
      %s139 = sphi 0, %s125
      %s143 = sphi 0, %s143
      %s145 = sphi 0, %s143
      %s146 = sphi 0, %s145
      %s160 = sphi 0, %s146
      %s164 = sphi 0, %s164
      %s166 = sphi 0, %s164
      %s167 = sphi 0, %s166
      %s181 = sphi 0, %s167
      %s185 = sphi 0, %s185
      %s187 = sphi 0, %s185
      %s188 = sphi 0, %s187
      %s202 = sphi 0, %s188
      %s208 = sphi 0, %s210
      %s211 = sphi 0, %s208
      %s212 = sphi 0, %s211
      %s228 = sphi 0, %s212
      %s234 = sphi 0, %s236
      %s237 = sphi 0, %s234
      %s238 = sphi 0, %s237
      %s254 = sphi 0, %s238
    $region4: #{tpu_custom_call.1} parent=1 // loop_header_branch
      %23 = sbr.rel (%p21) target = $region8
    $region5: #{tpu_custom_call.1} parent=1 // loop_body
      %s25 = ssub.s32 %s20, 1
      %s26 = ssub.s32 %s20, 2
      %s27 = sadd.s32 %s20, 1
      %s28 = ssub.s32 %s20, %s27
      %p29 = scmp.eq.s32.totalorder %s28, 0
      %s31 = sadd.s32 %s30, 1
      %s32 = scalar_select %p29, %s30, %s31
      %p35 = pneg %p29
      %p36 = scmp.eq.s32.totalorder %s20, 1
      %p37 = por %p35, %p36
      %p38 = scmp.ne.s32.totalorder %s30, %s33
      %p39 = scmp.eq.s32.totalorder %s20, 0
      %p40 = por %p38, %p39
      %p41 = scmp.ne.s32.totalorder %s30, %s33
      %p42 = scmp.eq.s32.totalorder %s25, 1
      %p43 = por %p41, %p42
      %p44 = scmp.ne.s32.totalorder %s33, %s34
      %p45 = scmp.eq.s32.totalorder %s25, 0
      %p46 = por %p44, %p45
      %p47 = scmp.ne.s32.totalorder %s33, %s34
      %p48 = scmp.eq.s32.totalorder %s26, 1
      %p49 = por %p47, %p48
      %p51 = scmp.ne.s32.totalorder %s34, %s50
      %p52 = scmp.eq.s32.totalorder %s26, 0
      %p53 = por %p51, %p52
      %s54 = ssub.s32 %s20, %s27
      %p55 = scmp.eq.s32.totalorder %s54, 0
      %s57 = sadd.s32 %s56, 1
      %s58 = scalar_select %p55, %s56, %s57
      %p61 = pneg %p55
      %p62 = scmp.eq.s32.totalorder %s20, 1
      %p63 = por %p61, %p62
      %p64 = scmp.ne.s32.totalorder %s56, %s59
      %p65 = scmp.eq.s32.totalorder %s20, 0
      %p66 = por %p64, %p65
      %p67 = scmp.ne.s32.totalorder %s56, %s59
      %p68 = scmp.eq.s32.totalorder %s25, 1
      %p69 = por %p67, %p68
      %p70 = scmp.ne.s32.totalorder %s59, %s60
      %p71 = scmp.eq.s32.totalorder %s25, 0
      %p72 = por %p70, %p71
      %p73 = scmp.ne.s32.totalorder %s59, %s60
      %p74 = scmp.eq.s32.totalorder %s26, 1
      %p75 = por %p73, %p74
      %p77 = scmp.ne.s32.totalorder %s60, %s76
      %p78 = scmp.eq.s32.totalorder %s26, 0
      %p79 = por %p77, %p78
      %s81 = sadd.s32 %s80, 1
      %p84 = scmp.eq.s32.totalorder %s20, 1
      %p85 = scmp.ne.s32.totalorder %s80, %s82
      %p86 = scmp.eq.s32.totalorder %s20, 0
      %p87 = por %p85, %p86
      %p88 = scmp.ne.s32.totalorder %s80, %s82
      %p89 = scmp.eq.s32.totalorder %s25, 1
      %p90 = por %p88, %p89
      %p91 = scmp.ne.s32.totalorder %s82, %s83
      %p92 = scmp.eq.s32.totalorder %s25, 0
      %p93 = por %p91, %p92
      %p94 = scmp.ne.s32.totalorder %s82, %s83
      %p95 = scmp.eq.s32.totalorder %s26, 1
      %p96 = por %p94, %p95
      %p98 = scmp.ne.s32.totalorder %s83, %s97
      %p99 = scmp.eq.s32.totalorder %s26, 0
      %p100 = por %p98, %p99
      %s102 = sadd.s32 %s101, 1
      %p105 = scmp.eq.s32.totalorder %s20, 1
      %p106 = scmp.ne.s32.totalorder %s101, %s103
      %p107 = scmp.eq.s32.totalorder %s20, 0
      %p108 = por %p106, %p107
      %p109 = scmp.ne.s32.totalorder %s101, %s103
      %p110 = scmp.eq.s32.totalorder %s25, 1
      %p111 = por %p109, %p110
      %p112 = scmp.ne.s32.totalorder %s103, %s104
      %p113 = scmp.eq.s32.totalorder %s25, 0
      %p114 = por %p112, %p113
      %p115 = scmp.ne.s32.totalorder %s103, %s104
      %p116 = scmp.eq.s32.totalorder %s26, 1
      %p117 = por %p115, %p116
      %p119 = scmp.ne.s32.totalorder %s104, %s118
      %p120 = scmp.eq.s32.totalorder %s26, 0
      %p121 = por %p119, %p120
      %s123 = sadd.s32 %s122, 1
      %p126 = scmp.eq.s32.totalorder %s20, 1
      %p127 = scmp.ne.s32.totalorder %s122, %s124
      %p128 = scmp.eq.s32.totalorder %s20, 0
      %p129 = por %p127, %p128
      %p130 = scmp.ne.s32.totalorder %s122, %s124
      %p131 = scmp.eq.s32.totalorder %s25, 1
      %p132 = por %p130, %p131
      %p133 = scmp.ne.s32.totalorder %s124, %s125
      %p134 = scmp.eq.s32.totalorder %s25, 0
      %p135 = por %p133, %p134
      %p136 = scmp.ne.s32.totalorder %s124, %s125
      %p137 = scmp.eq.s32.totalorder %s26, 1
      %p138 = por %p136, %p137
      %p140 = scmp.ne.s32.totalorder %s125, %s139
      %p141 = scmp.eq.s32.totalorder %s26, 0
      %p142 = por %p140, %p141
      %s144 = sadd.s32 %s143, 1
      %p147 = scmp.eq.s32.totalorder %s20, 1
      %p148 = scmp.ne.s32.totalorder %s143, %s145
      %p149 = scmp.eq.s32.totalorder %s20, 0
      %p150 = por %p148, %p149
      %p151 = scmp.ne.s32.totalorder %s143, %s145
      %p152 = scmp.eq.s32.totalorder %s25, 1
      %p153 = por %p151, %p152
      %p154 = scmp.ne.s32.totalorder %s145, %s146
      %p155 = scmp.eq.s32.totalorder %s25, 0
      %p156 = por %p154, %p155
      %p157 = scmp.ne.s32.totalorder %s145, %s146
      %p158 = scmp.eq.s32.totalorder %s26, 1
      %p159 = por %p157, %p158
      %p161 = scmp.ne.s32.totalorder %s146, %s160
      %p162 = scmp.eq.s32.totalorder %s26, 0
      %p163 = por %p161, %p162
      %s165 = sadd.s32 %s164, 1
      %p168 = scmp.eq.s32.totalorder %s20, 1
      %p169 = scmp.ne.s32.totalorder %s164, %s166
      %p170 = scmp.eq.s32.totalorder %s20, 0
      %p171 = por %p169, %p170
      %p172 = scmp.ne.s32.totalorder %s164, %s166
      %p173 = scmp.eq.s32.totalorder %s25, 1
      %p174 = por %p172, %p173
      %p175 = scmp.ne.s32.totalorder %s166, %s167
      %p176 = scmp.eq.s32.totalorder %s25, 0
      %p177 = por %p175, %p176
      %p178 = scmp.ne.s32.totalorder %s166, %s167
      %p179 = scmp.eq.s32.totalorder %s26, 1
      %p180 = por %p178, %p179
      %p182 = scmp.ne.s32.totalorder %s167, %s181
      %p183 = scmp.eq.s32.totalorder %s26, 0
      %p184 = por %p182, %p183
      %s186 = sadd.s32 %s185, 1
      %p189 = scmp.eq.s32.totalorder %s20, 1
      %p190 = scmp.ne.s32.totalorder %s185, %s187
      %p191 = scmp.eq.s32.totalorder %s20, 0
      %p192 = por %p190, %p191
      %p193 = scmp.ne.s32.totalorder %s185, %s187
      %p194 = scmp.eq.s32.totalorder %s25, 1
      %p195 = por %p193, %p194
      %p196 = scmp.ne.s32.totalorder %s187, %s188
      %p197 = scmp.eq.s32.totalorder %s25, 0
      %p198 = por %p196, %p197
      %p199 = scmp.ne.s32.totalorder %s187, %s188
      %p200 = scmp.eq.s32.totalorder %s26, 1
      %p201 = por %p199, %p200
      %p203 = scmp.ne.s32.totalorder %s188, %s202
      %p204 = scmp.eq.s32.totalorder %s26, 0
      %p205 = por %p203, %p204
      %s206 = ssub.s32 %s20, %s27
      %p207 = scmp.eq.s32.totalorder %s206, 0
      %s209 = sadd.s32 %s208, 1
      %s210 = scalar_select %p207, %s208, %s209
      %p213 = pneg %p207
      %p214 = scmp.eq.s32.totalorder %s20, 1
      %p215 = por %p213, %p214
      %p216 = scmp.ne.s32.totalorder %s208, %s211
      %p217 = scmp.eq.s32.totalorder %s20, 0
      %p218 = por %p216, %p217
      %p219 = scmp.ne.s32.totalorder %s208, %s211
      %p220 = scmp.eq.s32.totalorder %s25, 1
      %p221 = por %p219, %p220
      %p222 = scmp.ne.s32.totalorder %s211, %s212
      %p223 = scmp.eq.s32.totalorder %s25, 0
      %p224 = por %p222, %p223
      %p225 = scmp.ne.s32.totalorder %s211, %s212
      %p226 = scmp.eq.s32.totalorder %s26, 1
      %p227 = por %p225, %p226
      %p229 = scmp.ne.s32.totalorder %s212, %s228
      %p230 = scmp.eq.s32.totalorder %s26, 0
      %p231 = por %p229, %p230
      %s232 = ssub.s32 %s20, %s27
      %p233 = scmp.eq.s32.totalorder %s232, 0
      %s235 = sadd.s32 %s234, 1
      %s236 = scalar_select %p233, %s234, %s235
      %p239 = pneg %p233
      %p240 = scmp.eq.s32.totalorder %s20, 1
      %p241 = por %p239, %p240
      %p242 = scmp.ne.s32.totalorder %s234, %s237
      %p243 = scmp.eq.s32.totalorder %s20, 0
      %p244 = por %p242, %p243
      %p245 = scmp.ne.s32.totalorder %s234, %s237
      %p246 = scmp.eq.s32.totalorder %s25, 1
      %p247 = por %p245, %p246
      %p248 = scmp.ne.s32.totalorder %s237, %s238
      %p249 = scmp.eq.s32.totalorder %s25, 0
      %p250 = por %p248, %p249
      %p251 = scmp.ne.s32.totalorder %s237, %s238
      %p252 = scmp.eq.s32.totalorder %s26, 1
      %p253 = por %p251, %p252
      %p255 = scmp.ne.s32.totalorder %s238, %s254
      %p256 = scmp.eq.s32.totalorder %s26, 0
      %p257 = por %p255, %p256
      %p258 = scmp.le.s32.totalorder 1, %s20
      %p259 = scmp.lt.s32.totalorder %s20, 3
      %p260 = pnand %p258, %p259
      %p261 = pneg %p260
      // Predicated region
      $region9: #{tpu_custom_call.1} parent=5 // pred_check
        _
      $region10: #{tpu_custom_call.1} parent=5 // pred_check_branch
        %263 = sbr.rel (%p260) target = $region12
      $region11: #{tpu_custom_call.1} parent=5 // pred_region
        %s264 = ssub.s32 %s20, 1
        // Predicated region
        $region13: #{tpu_custom_call.1} parent=11 // pred_check
          %p265 = pneg %p93
        $region14: #{tpu_custom_call.1} parent=11 // pred_check_branch
          %267 = sbr.rel (%p265) target = $region16
        $region15: #{tpu_custom_call.1} parent=11 // pred_region
          _
        $region16: #{tpu_custom_call.1} parent=11 // pred_fallthru
          _
        // Predicated region
        $region17: #{tpu_custom_call.1} parent=11 // pred_check
          %p268 = pneg %p114
        $region18: #{tpu_custom_call.1} parent=11 // pred_check_branch
          %270 = sbr.rel (%p268) target = $region20
        $region19: #{tpu_custom_call.1} parent=11 // pred_region
          _
        $region20: #{tpu_custom_call.1} parent=11 // pred_fallthru
          _
        // Predicated region
        $region21: #{tpu_custom_call.1} parent=11 // pred_check
          %p271 = pneg %p135
        $region22: #{tpu_custom_call.1} parent=11 // pred_check_branch
          %273 = sbr.rel (%p271) target = $region24
        $region23: #{tpu_custom_call.1} parent=11 // pred_region
          _
        $region24: #{tpu_custom_call.1} parent=11 // pred_fallthru
          _
        // Predicated region
        $region25: #{tpu_custom_call.1} parent=11 // pred_check
          %p274 = pneg %p156
        $region26: #{tpu_custom_call.1} parent=11 // pred_check_branch
          %276 = sbr.rel (%p274) target = $region28
        $region27: #{tpu_custom_call.1} parent=11 // pred_region
          _
        $region28: #{tpu_custom_call.1} parent=11 // pred_fallthru
          _
        // Predicated region
        $region29: #{tpu_custom_call.1} parent=11 // pred_check
          %p277 = pneg %p177
        $region30: #{tpu_custom_call.1} parent=11 // pred_check_branch
          %279 = sbr.rel (%p277) target = $region32
        $region31: #{tpu_custom_call.1} parent=11 // pred_region
          %s281 = ssub.s32 512, 512
          %282 = vsyncadd [#allocation5], %s281
          %s283 = sshll.u32 [#allocation4], 4
          %s284 = int_to_ptr.vmem [resolvable:$true] %s283
          %289 = dma.hbm_to_vmem [thread:$0]  %s6, 512, %s284, [#allocation5], 128, 128, 8
        $region32: #{tpu_custom_call.1} parent=11 // pred_fallthru
          _
        // Predicated region
        $region33: #{tpu_custom_call.1} parent=11 // pred_check
          %p290 = pneg %p198
        $region34: #{tpu_custom_call.1} parent=11 // pred_check_branch
          %292 = sbr.rel (%p290) target = $region36
        $region35: #{tpu_custom_call.1} parent=11 // pred_region
          _
        $region36: #{tpu_custom_call.1} parent=11 // pred_fallthru
          _
      $region12: #{tpu_custom_call.1} parent=5 // pred_fallthru
        _
      %p293 = scmp.lt.s32.totalorder %s20, 2
      // Predicated region
      $region37: #{tpu_custom_call.1} parent=5 // pred_check
        %p294 = pneg %p293
      $region38: #{tpu_custom_call.1} parent=5 // pred_check_branch
        %296 = sbr.rel (%p294) target = $region40
      $region39: #{tpu_custom_call.1} parent=5 // pred_region
        // Predicated region
        $region41: #{tpu_custom_call.1} parent=39 // pred_check
          %p297 = pneg %p40
        $region42: #{tpu_custom_call.1} parent=39 // pred_check_branch
          %299 = sbr.rel (%p297) target = $region44
        $region43: #{tpu_custom_call.1} parent=39 // pred_region
          %s300 = sand.u32 %s30, 1
          %s301 = scalar_lea.sflag [#allocation3], %s300
          %s302 = sand.u32 %s30, 1
          %s303 = smul.addr %s302, 32
          %s304 = scalar_lea.vmem [#allocation2], %s303
          %s305 = smul.u32 4, %s20
          %s307 = ssub.s32 512, 512
          %308 = vsyncadd %s301, %s307
          %s309 = smul.addr %s305, 128
          %s310 = scalar_lea.hbm %s0, %s309
          %s311 = sshll.u32 %s304, 4
          %s312 = int_to_ptr.vmem [resolvable:$true] %s311
          %317 = dma.hbm_to_vmem [thread:$0]  %s310, 512, %s312, %s301, 128, 128, 8
        $region44: #{tpu_custom_call.1} parent=39 // pred_fallthru
          _
        // Predicated region
        $region45: #{tpu_custom_call.1} parent=39 // pred_check
          %p318 = pneg %p66
        $region46: #{tpu_custom_call.1} parent=39 // pred_check_branch
          %320 = sbr.rel (%p318) target = $region48
        $region47: #{tpu_custom_call.1} parent=39 // pred_region
          %s321 = smul.u32 4, %s20
          %p322 = scmp.lt.s32.totalorder %s321, 7
          %s323 = scalar_select %p322, %s321, 7
          %s324 = scalar_lea.vmem %s1, %s323
          %s325 = smul.u32 4, %s20
        $region48: #{tpu_custom_call.1} parent=39 // pred_fallthru
          _
      $region40: #{tpu_custom_call.1} parent=5 // pred_fallthru
        _
      %p326 = scmp.le.s32.totalorder 1, %s20
      %p327 = scmp.lt.s32.totalorder %s20, 3
      %p328 = pnand %p326, %p327
      %p329 = pneg %p328
      // Predicated region
      $region49: #{tpu_custom_call.1} parent=5 // pred_check
        _
      $region50: #{tpu_custom_call.1} parent=5 // pred_check_branch
        %331 = sbr.rel (%p328) target = $region52
      $region51: #{tpu_custom_call.1} parent=5 // pred_region
        %s332 = ssub.s32 %s20, 1
        %s333 = sand.u32 %s33, 1
        %s334 = scalar_lea.sflag [#allocation3], %s333
        %s335 = sand.u32 %s33, 1
        %s336 = smul.addr %s335, 32
        %s337 = scalar_lea.vmem [#allocation2], %s336
        // Predicated region
        $region53: #{tpu_custom_call.1} parent=51 // pred_check
          %p338 = pneg %p46
        $region54: #{tpu_custom_call.1} parent=51 // pred_check_branch
          %340 = sbr.rel (%p338) target = $region56
        $region55: #{tpu_custom_call.1} parent=51 // pred_region
          %341 = dma.done %s334, 512
        $region56: #{tpu_custom_call.1} parent=51 // pred_fallthru
          _
        // Predicated region
        $region57: #{tpu_custom_call.1} parent=51 // pred_check
          %p342 = pneg %p177
        $region58: #{tpu_custom_call.1} parent=51 // pred_check_branch
          %344 = sbr.rel (%p342) target = $region60
        $region59: #{tpu_custom_call.1} parent=51 // pred_region
          %345 = dma.done [#allocation5], 512
        $region60: #{tpu_custom_call.1} parent=51 // pred_fallthru
          _
        %s346 = sand.u32 %s33, 1
        %s347 = scalar_lea.sflag [#allocation3], %s346
        %s348 = sand.u32 %s33, 1
        %s349 = smul.addr %s348, 32
        %s350 = scalar_lea.vmem [#allocation2], %s349
        %p351 = pneg %p46
        %p352 = pneg %p43
        %s353 = smul.u32 4, %s25
        %p354 = scmp.lt.s32.totalorder %s353, 7
        %s355 = scalar_select %p354, %s353, 7
        %s356 = scalar_lea.vmem %s1, %s355
        %p357 = pneg %p72
        %p358 = pneg %p69
        %p359 = pneg %p93
        %p360 = pneg %p90
        %p361 = pneg %p114
        %p362 = pneg %p111
        %p363 = pneg %p135
        %p364 = pneg %p132
        %p365 = pneg %p156
        %p366 = pneg %p153
        %p367 = pneg %p177
        %p368 = pneg %p174
        %p369 = pneg %p198
        %p370 = pneg %p195
        %p371 = pneg %p224
        %p372 = pneg %p221
        %s373 = smul.u32 4, %s25
        %p374 = scmp.lt.s32.totalorder %s373, 7
        %s375 = scalar_select %p374, %s373, 7
        %s376 = smul.addr %s375, 8
        %s377 = scalar_lea.vmem %s8, %s376
        %p378 = pneg %p250
        %p379 = pneg %p247
        %s380 = smul.u32 4, %s25
        %p381 = scmp.lt.s32.totalorder %s380, 7
        %s382 = scalar_select %p381, %s380, 7
        %s383 = smul.addr %s382, 8
        %s384 = scalar_lea.vmem %s9, %s383
        %s385 = smul.u32 4, %s25
        %s386 = smul.u32 4, %s25
        %p387 = scmp.lt.s32.totalorder %s386, 7
        %s388 = scalar_select %p387, %s386, 7
        %s389 = scalar_lea.vmem %s1, %s388
        %s390 = smul.u32 4, %s25
        %s391 = smul.u32 4, %s25
        %p392 = scmp.lt.s32.totalorder %s391, 7
        %s393 = scalar_select %p392, %s391, 7
        %s394 = smul.addr %s393, 8
        %s395 = scalar_lea.vmem %s8, %s394
        %s396 = smul.u32 4, %s25
        %s397 = smul.u32 4, %s25
        %p398 = scmp.lt.s32.totalorder %s397, 7
        %s399 = scalar_select %p398, %s397, 7
        %s400 = smul.addr %s399, 8
        %s401 = scalar_lea.vmem %s9, %s400
        %s402 = smul.u32 4, %s25
        %v403 = vld [vmem:[%s337] sm:$0xff]
        %v404 = vld [vmem:[%s337 + $0x8] sm:$0xff]
        %v405 = vld [vmem:[%s337 + $0x10] sm:$0xff]
        %v406 = vld [vmem:[%s337 + $0x18] sm:$0xff]
        %v407 = vld [vmem:[%s2] sm:$0xff]
        %v408 = vld [vmem:[%s2 + $0x8] sm:$0xff]
        %v409 = vld [vmem:[%s2 + $0x10] sm:$0xff]
        %v410 = vld [vmem:[%s2 + $0x18] sm:$0xff]
        %v411 = vld [vmem:[%s3] sm:$0x1]
        %v413 = vlaneseq
        %v414 = vshrl.u32 %v413, 7
        %v415 = vsub.s32 0, %v414
        %v416 = vrot.slane %v411, %v415
        %vm418 = vcmask 261120
        %v420 = vsel %vm418, %v403, 0
        %v423 = vsel %vm418, %v404, 0
        %v426 = vsel %vm418, %v405, 0
        %v429 = vsel %vm418, %v406, 0
        %431 = vmatprep.subr.mxu0 0.0
        %432 = vmatpush1.msra.mxu0 0.0
        %433 = vmatprep.subr.mxu0 0.0
        %434 = vmatpush1.msra.mxu0 0.0
        %435 = vmatprep.subr.mxu0 0.0
        %436 = vmatpush1.msra.mxu0 0.0
        %437 = vmatprep.subr.mxu0 0.0
        %438 = vmatpush1.msra.mxu0 0.0
        %439 = vmatprep.subr.mxu0 0.0
        %440 = vmatpush1.msra.mxu0 0.0
        %441 = vmatprep.subr.mxu0 0.0
        %442 = vmatpush1.msra.mxu0 0.0
        %443 = vmatprep.subr.mxu0 0.0
        %444 = vmatpush1.msra.mxu0 0.0
        %445 = vmatprep.subr.mxu0 0.0
        %446 = vmatpush1.msra.mxu0 0.0
        %447 = vmatprep.subr.mxu0 0.0
        %448 = vmatpush1.msra.mxu0 0.0
        %449 = vmatprep.subr.mxu0 0.0
        %450 = vmatpush1.msra.mxu0 0.0
        %451 = vmatprep.subr.mxu0 0.0
        %452 = vmatpush1.msra.mxu0 0.0
        %453 = vmatprep.subr.mxu0 0.0
        %454 = vmatpush1.msra.mxu0 0.0
        %455 = vmatprep.subr.mxu0 0.0
        %456 = vmatpush1.msra.mxu0 %v410
        %457 = vmatprep.subr.mxu0 0.0
        %458 = vmatpush1.msra.mxu0 %v409
        %459 = vmatprep.subr.mxu0 0.0
        %460 = vmatpush1.msra.mxu0 %v408
        %461 = vmatprep.subr.mxu0 0.0
        %462 = vmatpush1.msra.mxu0 %v407
        %463 = vmatprep.subr.mxu0 0.0
        %464 = vmatpush2.msra.mxu0 0.0
        %465 = vmatprep.subr.mxu0 0.0
        %466 = vmatpush2.msra.mxu0 0.0
        %467 = vmatprep.subr.mxu0 0.0
        %468 = vmatpush2.msra.mxu0 0.0
        %469 = vmatprep.subr.mxu0 0.0
        %470 = vmatpush2.msra.mxu0 0.0
        %471 = vmatprep.subr.mxu0 0.0
        %472 = vmatpush2.msra.mxu0 0.0
        %473 = vmatprep.subr.mxu0 0.0
        %474 = vmatpush2.msra.mxu0 0.0
        %475 = vmatprep.subr.mxu0 0.0
        %476 = vmatpush2.msra.mxu0 0.0
        %477 = vmatprep.subr.mxu0 0.0
        %478 = vmatpush2.msra.mxu0 0.0
        %479 = vmatprep.subr.mxu0 0.0
        %480 = vmatpush2.msra.mxu0 0.0
        %481 = vmatprep.subr.mxu0 0.0
        %482 = vmatpush2.msra.mxu0 0.0
        %483 = vmatprep.subr.mxu0 0.0
        %484 = vmatpush2.msra.mxu0 0.0
        %485 = vmatprep.subr.mxu0 0.0
        %486 = vmatpush2.msra.mxu0 0.0
        %487 = vmatprep.subr.mxu0 0.0
        %488 = vmatpush2.msra.mxu0 0.0
        %489 = vmatprep.subr.mxu0 0.0
        %490 = vmatpush2.msra.mxu0 0.0
        %491 = vmatprep.subr.mxu0 0.0
        %492 = vmatpush2.msra.mxu0 0.0
        %493 = vmatprep.subr.mxu0 0.0
        %494 = vmatpush2.msra.mxu0 0.0
        %495 = vmatprep.mubr.f32.mxu0 0.0
        %496 = vmatmul.mubr.f32.gmra.mxu0 %v420
        %v497 = vpop.f32.mrf.mxu0
        %v498 = vadd.f32 %v416, %v497
        %v499 = vpop.f32.mrf.mxu0
        %500 = vmatprep.mubr.f32.mxu0 0.0
        %501 = vmatmul.mubr.f32.gmra.mxu0 %v423
        %v502 = vpop.f32.mrf.mxu0
        %v503 = vadd.f32 %v416, %v502
        %v504 = vpop.f32.mrf.mxu0
        %505 = vmatprep.mubr.f32.mxu0 0.0
        %506 = vmatmul.mubr.f32.gmra.mxu0 %v426
        %v507 = vpop.f32.mrf.mxu0
        %v508 = vadd.f32 %v416, %v507
        %v509 = vpop.f32.mrf.mxu0
        %510 = vmatprep.mubr.f32.mxu0 0.0
        %511 = vmatmul.mubr.f32.gmra.mxu0 %v429
        %v512 = vpop.f32.mrf.mxu0
        %v513 = vadd.f32 %v416, %v512
        %v514 = vpop.f32.mrf.mxu0
        %515 = vdwg.mxu0
        %v516 = vtanh.pop %v498
        %v517 = vtanh.pop %v503
        %v518 = vtanh.pop %v508
        %v519 = vtanh.pop %v513
        %v520 = vld [vmem:[%s4] sm:$0xff]
        %v521 = vld [vmem:[%s4 + $0x8] sm:$0xff]
        %v522 = vld [vmem:[%s4 + $0x10] sm:$0xff]
        %v523 = vld [vmem:[%s4 + $0x18] sm:$0xff]
        %v524 = vld [vmem:[%s5] sm:$0x1]
        %v526 = vlaneseq
        %v527 = vshrl.u32 %v526, 7
        %v528 = vsub.s32 0, %v527
        %v529 = vrot.slane %v524, %v528
        %v532 = vsel %vm418, %v516, 0
        %v535 = vsel %vm418, %v517, 0
        %v538 = vsel %vm418, %v518, 0
        %v541 = vsel %vm418, %v519, 0
        %543 = vmatprep.subr.mxu0 0.0
        %544 = vmatpush1.msra.mxu0 0.0
        %545 = vmatprep.subr.mxu0 0.0
        %546 = vmatpush1.msra.mxu0 0.0
        %547 = vmatprep.subr.mxu0 0.0
        %548 = vmatpush1.msra.mxu0 0.0
        %549 = vmatprep.subr.mxu0 0.0
        %550 = vmatpush1.msra.mxu0 0.0
        %551 = vmatprep.subr.mxu0 0.0
        %552 = vmatpush1.msra.mxu0 0.0
        %553 = vmatprep.subr.mxu0 0.0
        %554 = vmatpush1.msra.mxu0 0.0
        %555 = vmatprep.subr.mxu0 0.0
        %556 = vmatpush1.msra.mxu0 0.0
        %557 = vmatprep.subr.mxu0 0.0
        %558 = vmatpush1.msra.mxu0 0.0
        %559 = vmatprep.subr.mxu0 0.0
        %560 = vmatpush1.msra.mxu0 0.0
        %561 = vmatprep.subr.mxu0 0.0
        %562 = vmatpush1.msra.mxu0 0.0
        %563 = vmatprep.subr.mxu0 0.0
        %564 = vmatpush1.msra.mxu0 0.0
        %565 = vmatprep.subr.mxu0 0.0
        %566 = vmatpush1.msra.mxu0 0.0
        %567 = vmatprep.subr.mxu0 0.0
        %568 = vmatpush1.msra.mxu0 %v523
        %569 = vmatprep.subr.mxu0 0.0
        %570 = vmatpush1.msra.mxu0 %v522
        %571 = vmatprep.subr.mxu0 0.0
        %572 = vmatpush1.msra.mxu0 %v521
        %573 = vmatprep.subr.mxu0 0.0
        %574 = vmatpush1.msra.mxu0 %v520
        %575 = vmatprep.subr.mxu0 0.0
        %576 = vmatpush2.msra.mxu0 0.0
        %577 = vmatprep.subr.mxu0 0.0
        %578 = vmatpush2.msra.mxu0 0.0
        %579 = vmatprep.subr.mxu0 0.0
        %580 = vmatpush2.msra.mxu0 0.0
        %581 = vmatprep.subr.mxu0 0.0
        %582 = vmatpush2.msra.mxu0 0.0
        %583 = vmatprep.subr.mxu0 0.0
        %584 = vmatpush2.msra.mxu0 0.0
        %585 = vmatprep.subr.mxu0 0.0
        %586 = vmatpush2.msra.mxu0 0.0
        %587 = vmatprep.subr.mxu0 0.0
        %588 = vmatpush2.msra.mxu0 0.0
        %589 = vmatprep.subr.mxu0 0.0
        %590 = vmatpush2.msra.mxu0 0.0
        %591 = vmatprep.subr.mxu0 0.0
        %592 = vmatpush2.msra.mxu0 0.0
        %593 = vmatprep.subr.mxu0 0.0
        %594 = vmatpush2.msra.mxu0 0.0
        %595 = vmatprep.subr.mxu0 0.0
        %596 = vmatpush2.msra.mxu0 0.0
        %597 = vmatprep.subr.mxu0 0.0
        %598 = vmatpush2.msra.mxu0 0.0
        %599 = vmatprep.subr.mxu0 0.0
        %600 = vmatpush2.msra.mxu0 0.0
        %601 = vmatprep.subr.mxu0 0.0
        %602 = vmatpush2.msra.mxu0 0.0
        %603 = vmatprep.subr.mxu0 0.0
        %604 = vmatpush2.msra.mxu0 0.0
        %605 = vmatprep.subr.mxu0 0.0
        %606 = vmatpush2.msra.mxu0 0.0
        %607 = vmatprep.mubr.f32.mxu0 0.0
        %608 = vmatmul.mubr.f32.gmra.mxu0 %v532
        %v609 = vpop.f32.mrf.mxu0
        %v610 = vadd.f32 %v529, %v609
        %v611 = vpop.f32.mrf.mxu0
        %612 = vmatprep.mubr.f32.mxu0 0.0
        %613 = vmatmul.mubr.f32.gmra.mxu0 %v535
        %v614 = vpop.f32.mrf.mxu0
        %v615 = vadd.f32 %v529, %v614
        %v616 = vpop.f32.mrf.mxu0
        %617 = vmatprep.mubr.f32.mxu0 0.0
        %618 = vmatmul.mubr.f32.gmra.mxu0 %v538
        %v619 = vpop.f32.mrf.mxu0
        %v620 = vadd.f32 %v529, %v619
        %v621 = vpop.f32.mrf.mxu0
        %622 = vmatprep.mubr.f32.mxu0 0.0
        %623 = vmatmul.mubr.f32.gmra.mxu0 %v541
        %v624 = vpop.f32.mrf.mxu0
        %v625 = vadd.f32 %v529, %v624
        %v626 = vpop.f32.mrf.mxu0
        %627 = vdwg.mxu0
        %628 = vxpose.xlu0.b32.start [1/16] %v610, 128
        %629 = vxpose.xlu0.b32.cont [2/16] 0.0, 128
        %630 = vxpose.xlu0.b32.cont [3/16] 0.0, 128
        %631 = vxpose.xlu0.b32.cont [4/16] 0.0, 128
        %632 = vxpose.xlu0.b32.cont [5/16] 0.0, 128
        %633 = vxpose.xlu0.b32.cont [6/16] 0.0, 128
        %634 = vxpose.xlu0.b32.cont [7/16] 0.0, 128
        %635 = vxpose.xlu0.b32.cont [8/16] 0.0, 128
        %636 = vxpose.xlu0.b32.cont [9/16] 0.0, 128
        %637 = vxpose.xlu0.b32.cont [10/16] 0.0, 128
        %638 = vxpose.xlu0.b32.cont [11/16] 0.0, 128
        %639 = vxpose.xlu0.b32.cont [12/16] 0.0, 128
        %640 = vxpose.xlu0.b32.cont [13/16] 0.0, 128
        %641 = vxpose.xlu0.b32.cont [14/16] 0.0, 128
        %642 = vxpose.xlu0.b32.cont [15/16] 0.0, 128
        %643 = vxpose.xlu0.b32.end [16/16] 0.0, 128
        %v644 = vpop.trf.xlu0
        %v645 = vpop.trf.xlu0
        %v646 = vpop.trf.xlu0
        %v647 = vpop.trf.xlu0
        %v648 = vpop.trf.xlu0
        %v649 = vpop.trf.xlu0
        %v650 = vpop.trf.xlu0
        %v651 = vpop.trf.xlu0
        %v652 = vpop.trf.xlu0
        %v653 = vpop.trf.xlu0
        %v654 = vpop.trf.xlu0
        %v655 = vpop.trf.xlu0
        %v656 = vpop.trf.xlu0
        %v657 = vpop.trf.xlu0
        %v658 = vpop.trf.xlu0
        %v659 = vpop.trf.xlu0
        %660 = vxpose.xlu0.b32.start [1/16] %v615, 128
        %661 = vxpose.xlu0.b32.cont [2/16] 0.0, 128
        %662 = vxpose.xlu0.b32.cont [3/16] 0.0, 128
        %663 = vxpose.xlu0.b32.cont [4/16] 0.0, 128
        %664 = vxpose.xlu0.b32.cont [5/16] 0.0, 128
        %665 = vxpose.xlu0.b32.cont [6/16] 0.0, 128
        %666 = vxpose.xlu0.b32.cont [7/16] 0.0, 128
        %667 = vxpose.xlu0.b32.cont [8/16] 0.0, 128
        %668 = vxpose.xlu0.b32.cont [9/16] 0.0, 128
        %669 = vxpose.xlu0.b32.cont [10/16] 0.0, 128
        %670 = vxpose.xlu0.b32.cont [11/16] 0.0, 128
        %671 = vxpose.xlu0.b32.cont [12/16] 0.0, 128
        %672 = vxpose.xlu0.b32.cont [13/16] 0.0, 128
        %673 = vxpose.xlu0.b32.cont [14/16] 0.0, 128
        %674 = vxpose.xlu0.b32.cont [15/16] 0.0, 128
        %675 = vxpose.xlu0.b32.end [16/16] 0.0, 128
        %v676 = vpop.trf.xlu0
        %v677 = vpop.trf.xlu0
        %v678 = vpop.trf.xlu0
        %v679 = vpop.trf.xlu0
        %v680 = vpop.trf.xlu0
        %v681 = vpop.trf.xlu0
        %v682 = vpop.trf.xlu0
        %v683 = vpop.trf.xlu0
        %v684 = vpop.trf.xlu0
        %v685 = vpop.trf.xlu0
        %v686 = vpop.trf.xlu0
        %v687 = vpop.trf.xlu0
        %v688 = vpop.trf.xlu0
        %v689 = vpop.trf.xlu0
        %v690 = vpop.trf.xlu0
        %v691 = vpop.trf.xlu0
        %692 = vxpose.xlu0.b32.start [1/16] %v620, 128
        %693 = vxpose.xlu0.b32.cont [2/16] 0.0, 128
        %694 = vxpose.xlu0.b32.cont [3/16] 0.0, 128
        %695 = vxpose.xlu0.b32.cont [4/16] 0.0, 128
        %696 = vxpose.xlu0.b32.cont [5/16] 0.0, 128
        %697 = vxpose.xlu0.b32.cont [6/16] 0.0, 128
        %698 = vxpose.xlu0.b32.cont [7/16] 0.0, 128
        %699 = vxpose.xlu0.b32.cont [8/16] 0.0, 128
        %700 = vxpose.xlu0.b32.cont [9/16] 0.0, 128
        %701 = vxpose.xlu0.b32.cont [10/16] 0.0, 128
        %702 = vxpose.xlu0.b32.cont [11/16] 0.0, 128
        %703 = vxpose.xlu0.b32.cont [12/16] 0.0, 128
        %704 = vxpose.xlu0.b32.cont [13/16] 0.0, 128
        %705 = vxpose.xlu0.b32.cont [14/16] 0.0, 128
        %706 = vxpose.xlu0.b32.cont [15/16] 0.0, 128
        %707 = vxpose.xlu0.b32.end [16/16] 0.0, 128
        %v708 = vpop.trf.xlu0
        %v709 = vpop.trf.xlu0
        %v710 = vpop.trf.xlu0
        %v711 = vpop.trf.xlu0
        %v712 = vpop.trf.xlu0
        %v713 = vpop.trf.xlu0
        %v714 = vpop.trf.xlu0
        %v715 = vpop.trf.xlu0
        %v716 = vpop.trf.xlu0
        %v717 = vpop.trf.xlu0
        %v718 = vpop.trf.xlu0
        %v719 = vpop.trf.xlu0
        %v720 = vpop.trf.xlu0
        %v721 = vpop.trf.xlu0
        %v722 = vpop.trf.xlu0
        %v723 = vpop.trf.xlu0
        %724 = vxpose.xlu0.b32.start [1/16] %v625, 128
        %725 = vxpose.xlu0.b32.cont [2/16] 0.0, 128
        %726 = vxpose.xlu0.b32.cont [3/16] 0.0, 128
        %727 = vxpose.xlu0.b32.cont [4/16] 0.0, 128
        %728 = vxpose.xlu0.b32.cont [5/16] 0.0, 128
        %729 = vxpose.xlu0.b32.cont [6/16] 0.0, 128
        %730 = vxpose.xlu0.b32.cont [7/16] 0.0, 128
        %731 = vxpose.xlu0.b32.cont [8/16] 0.0, 128
        %732 = vxpose.xlu0.b32.cont [9/16] 0.0, 128
        %733 = vxpose.xlu0.b32.cont [10/16] 0.0, 128
        %734 = vxpose.xlu0.b32.cont [11/16] 0.0, 128
        %735 = vxpose.xlu0.b32.cont [12/16] 0.0, 128
        %736 = vxpose.xlu0.b32.cont [13/16] 0.0, 128
        %737 = vxpose.xlu0.b32.cont [14/16] 0.0, 128
        %738 = vxpose.xlu0.b32.cont [15/16] 0.0, 128
        %739 = vxpose.xlu0.b32.end [16/16] 0.0, 128
        %v740 = vpop.trf.xlu0
        %v741 = vpop.trf.xlu0
        %v742 = vpop.trf.xlu0
        %v743 = vpop.trf.xlu0
        %v744 = vpop.trf.xlu0
        %v745 = vpop.trf.xlu0
        %v746 = vpop.trf.xlu0
        %v747 = vpop.trf.xlu0
        %v748 = vpop.trf.xlu0
        %v749 = vpop.trf.xlu0
        %v750 = vpop.trf.xlu0
        %v751 = vpop.trf.xlu0
        %v752 = vpop.trf.xlu0
        %v753 = vpop.trf.xlu0
        %v754 = vpop.trf.xlu0
        %v755 = vpop.trf.xlu0
        %v756 = vld [vmem:[%s389] sm:$0x1]
        %v757 = vld [vmem:[%s389 + $0x1] sm:$0x1]
        %v758 = vld [vmem:[%s389 + $0x2] sm:$0x1]
        %v759 = vld [vmem:[%s389 + $0x3] sm:$0x1]
        %vm760 = vcmp.eq.f32.partialorder %v756, 0.0
        %vm761 = vcmp.eq.f32.partialorder %v757, 0.0
        %vm762 = vcmp.eq.f32.partialorder %v758, 0.0
        %vm763 = vcmp.eq.f32.partialorder %v759, 0.0
        %v764 = vsel %vm760, 1, 0
        %v765 = vsel %vm761, 1, 0
        %v766 = vsel %vm762, 1, 0
        %v767 = vsel %vm763, 1, 0
        %v768 = vlaneseq
        %v769 = vshrl.u32 %v768, 7
        %v770 = vsub.s32 0, %v769
        %v771 = vrot.slane %v764, %v770
        %v772 = vlaneseq
        %v773 = vshrl.u32 %v772, 7
        %v774 = vsub.s32 0, %v773
        %v775 = vrot.slane %v765, %v774
        %v776 = vlaneseq
        %v777 = vshrl.u32 %v776, 7
        %v778 = vsub.s32 0, %v777
        %v779 = vrot.slane %v766, %v778
        %v780 = vlaneseq
        %v781 = vshrl.u32 %v780, 7
        %v782 = vsub.s32 0, %v781
        %v783 = vrot.slane %v767, %v782
        %vm784 = vcmp.eq.s32.totalorder %v771, 1
        %vm785 = vcmp.eq.s32.totalorder %v775, 1
        %vm786 = vcmp.eq.s32.totalorder %v779, 1
        %vm787 = vcmp.eq.s32.totalorder %v783, 1
        %v788 = vsel %vm784, -10000.0, %v644
        %v789 = vsel %vm785, -10000.0, %v676
        %v790 = vsel %vm786, -10000.0, %v708
        %v791 = vsel %vm787, -10000.0, %v740
        %vm792 = vcmask 64512
        %v793 = vsel %vm792, %v788, -inf
        %794 = vmax.xlane.f32.xlu0 %v793
        %v795 = vpop.xlane.xlu0 %794
        %v796 = vsel %vm792, %v789, -inf
        %797 = vmax.xlane.f32.xlu0 %v796
        %v798 = vpop.xlane.xlu0 %797
        %v799 = vsel %vm792, %v790, -inf
        %800 = vmax.xlane.f32.xlu0 %v799
        %v801 = vpop.xlane.xlu0 %800
        %v802 = vsel %vm792, %v791, -inf
        %803 = vmax.xlane.f32.xlu0 %v802
        %v804 = vpop.xlane.xlu0 %803
        %v805 = vsub.f32 %v788, %v795
        %v806 = vsub.f32 %v789, %v798
        %v807 = vsub.f32 %v790, %v801
        %v808 = vsub.f32 %v791, %v804
        %v809 = vmul.f32 %v805, 1.442695
        %v810 = vpow.pop %v809
        %v811 = vmul.f32 %v806, 1.442695
        %v812 = vpow.pop %v811
        %v813 = vmul.f32 %v807, 1.442695
        %v814 = vpow.pop %v813
        %v815 = vmul.f32 %v808, 1.442695
        %v816 = vpow.pop %v815
        %v817 = vsel %vm792, %v810, 0.0
        %818 = vadd.xlane.f32.xlu0 %v817
        %v819 = vpop.xlane.xlu0 %818
        %v820 = vsel %vm792, %v812, 0.0
        %821 = vadd.xlane.f32.xlu0 %v820
        %v822 = vpop.xlane.xlu0 %821
        %v823 = vsel %vm792, %v814, 0.0
        %824 = vadd.xlane.f32.xlu0 %v823
        %v825 = vpop.xlane.xlu0 %824
        %v826 = vsel %vm792, %v816, 0.0
        %827 = vadd.xlane.f32.xlu0 %v826
        %v828 = vpop.xlane.xlu0 %827
        %v829 = vrcp.pop %v819
        %v830 = vrcp.pop %v822
        %v831 = vrcp.pop %v825
        %v832 = vrcp.pop %v828
        %v833 = vmul.f32 %v810, %v829
        %v834 = vmul.f32 %v812, %v830
        %v835 = vmul.f32 %v814, %v831
        %v836 = vmul.f32 %v816, %v832
        %v837 = vsel %vm784, 0.0, %v833
        %v838 = vsel %vm785, 0.0, %v834
        %v839 = vsel %vm786, 0.0, %v835
        %v840 = vsel %vm787, 0.0, %v836
        %841 = vst.msk [vmem:[%s401] sm:$0xff] %vm792, %v837
        %842 = vst.msk [vmem:[%s401 + $0x8] sm:$0xff] %vm792, %v838
        %843 = vst.msk [vmem:[%s401 + $0x10] sm:$0xff] %vm792, %v839
        %844 = vst.msk [vmem:[%s401 + $0x18] sm:$0xff] %vm792, %v840
        %v846 = vsel %vm792, %v837, 0
        %848 = vmatprep.subr.mxu0 0.0
        %849 = vmatpush1.msra.mxu0 0.0
        %850 = vmatprep.subr.mxu0 0.0
        %851 = vmatpush1.msra.mxu0 0.0
        %852 = vmatprep.subr.mxu0 0.0
        %853 = vmatpush1.msra.mxu0 0.0
        %854 = vmatprep.subr.mxu0 0.0
        %855 = vmatpush1.msra.mxu0 0.0
        %856 = vmatprep.subr.mxu0 0.0
        %857 = vmatpush1.msra.mxu0 0.0
        %858 = vmatprep.subr.mxu0 0.0
        %859 = vmatpush1.msra.mxu0 0.0
        %860 = vmatprep.subr.mxu0 0.0
        %861 = vmatpush1.msra.mxu0 0.0
        %862 = vmatprep.subr.mxu0 0.0
        %863 = vmatpush1.msra.mxu0 0.0
        %864 = vmatprep.subr.mxu0 0.0
        %865 = vmatpush1.msra.mxu0 0.0
        %866 = vmatprep.subr.mxu0 0.0
        %867 = vmatpush1.msra.mxu0 0.0
        %868 = vmatprep.subr.mxu0 0.0
        %869 = vmatpush1.msra.mxu0 0.0
        %870 = vmatprep.subr.mxu0 0.0
        %871 = vmatpush1.msra.mxu0 0.0
        %872 = vmatprep.subr.mxu0 0.0
        %873 = vmatpush1.msra.mxu0 0.0
        %874 = vmatprep.subr.mxu0 0.0
        %875 = vmatpush1.msra.mxu0 0.0
        %876 = vmatprep.subr.mxu0 0.0
        %877 = vmatpush1.msra.mxu0 0.0
        %878 = vmatprep.subr.mxu0 0.0
        %879 = vmatpush1.msra.mxu0 %v403
        %880 = vmatprep.subr.mxu0 0.0
        %881 = vmatpush2.msra.mxu0 0.0
        %882 = vmatprep.subr.mxu0 0.0
        %883 = vmatpush2.msra.mxu0 0.0
        %884 = vmatprep.subr.mxu0 0.0
        %885 = vmatpush2.msra.mxu0 0.0
        %886 = vmatprep.subr.mxu0 0.0
        %887 = vmatpush2.msra.mxu0 0.0
        %888 = vmatprep.subr.mxu0 0.0
        %889 = vmatpush2.msra.mxu0 0.0
        %890 = vmatprep.subr.mxu0 0.0
        %891 = vmatpush2.msra.mxu0 0.0
        %892 = vmatprep.subr.mxu0 0.0
        %893 = vmatpush2.msra.mxu0 0.0
        %894 = vmatprep.subr.mxu0 0.0
        %895 = vmatpush2.msra.mxu0 0.0
        %896 = vmatprep.subr.mxu0 0.0
        %897 = vmatpush2.msra.mxu0 0.0
        %898 = vmatprep.subr.mxu0 0.0
        %899 = vmatpush2.msra.mxu0 0.0
        %900 = vmatprep.subr.mxu0 0.0
        %901 = vmatpush2.msra.mxu0 0.0
        %902 = vmatprep.subr.mxu0 0.0
        %903 = vmatpush2.msra.mxu0 0.0
        %904 = vmatprep.subr.mxu0 0.0
        %905 = vmatpush2.msra.mxu0 0.0
        %906 = vmatprep.subr.mxu0 0.0
        %907 = vmatpush2.msra.mxu0 0.0
        %908 = vmatprep.subr.mxu0 0.0
        %909 = vmatpush2.msra.mxu0 0.0
        %910 = vmatprep.subr.mxu0 0.0
        %911 = vmatpush2.msra.mxu0 0.0
        %912 = vmatprep.mubr.f32.mxu0 0.0
        %913 = vmatmul.mubr.f32.gmra.mxu0 %v846
        %v914 = vpop.f32.mrf.mxu0
        %v915 = vadd.f32 0.0, %v914
        %v916 = vpop.f32.mrf.mxu0
        %917 = vdwg.mxu0
        %v919 = vsel %vm792, %v838, 0
        %921 = vmatprep.subr.mxu0 0.0
        %922 = vmatpush1.msra.mxu0 0.0
        %923 = vmatprep.subr.mxu0 0.0
        %924 = vmatpush1.msra.mxu0 0.0
        %925 = vmatprep.subr.mxu0 0.0
        %926 = vmatpush1.msra.mxu0 0.0
        %927 = vmatprep.subr.mxu0 0.0
        %928 = vmatpush1.msra.mxu0 0.0
        %929 = vmatprep.subr.mxu0 0.0
        %930 = vmatpush1.msra.mxu0 0.0
        %931 = vmatprep.subr.mxu0 0.0
        %932 = vmatpush1.msra.mxu0 0.0
        %933 = vmatprep.subr.mxu0 0.0
        %934 = vmatpush1.msra.mxu0 0.0
        %935 = vmatprep.subr.mxu0 0.0
        %936 = vmatpush1.msra.mxu0 0.0
        %937 = vmatprep.subr.mxu0 0.0
        %938 = vmatpush1.msra.mxu0 0.0
        %939 = vmatprep.subr.mxu0 0.0
        %940 = vmatpush1.msra.mxu0 0.0
        %941 = vmatprep.subr.mxu0 0.0
        %942 = vmatpush1.msra.mxu0 0.0
        %943 = vmatprep.subr.mxu0 0.0
        %944 = vmatpush1.msra.mxu0 0.0
        %945 = vmatprep.subr.mxu0 0.0
        %946 = vmatpush1.msra.mxu0 0.0
        %947 = vmatprep.subr.mxu0 0.0
        %948 = vmatpush1.msra.mxu0 0.0
        %949 = vmatprep.subr.mxu0 0.0
        %950 = vmatpush1.msra.mxu0 0.0
        %951 = vmatprep.subr.mxu0 0.0
        %952 = vmatpush1.msra.mxu0 %v404
        %953 = vmatprep.subr.mxu0 0.0
        %954 = vmatpush2.msra.mxu0 0.0
        %955 = vmatprep.subr.mxu0 0.0
        %956 = vmatpush2.msra.mxu0 0.0
        %957 = vmatprep.subr.mxu0 0.0
        %958 = vmatpush2.msra.mxu0 0.0
        %959 = vmatprep.subr.mxu0 0.0
        %960 = vmatpush2.msra.mxu0 0.0
        %961 = vmatprep.subr.mxu0 0.0
        %962 = vmatpush2.msra.mxu0 0.0
        %963 = vmatprep.subr.mxu0 0.0
        %964 = vmatpush2.msra.mxu0 0.0
        %965 = vmatprep.subr.mxu0 0.0
        %966 = vmatpush2.msra.mxu0 0.0
        %967 = vmatprep.subr.mxu0 0.0
        %968 = vmatpush2.msra.mxu0 0.0
        %969 = vmatprep.subr.mxu0 0.0
        %970 = vmatpush2.msra.mxu0 0.0
        %971 = vmatprep.subr.mxu0 0.0
        %972 = vmatpush2.msra.mxu0 0.0
        %973 = vmatprep.subr.mxu0 0.0
        %974 = vmatpush2.msra.mxu0 0.0
        %975 = vmatprep.subr.mxu0 0.0
        %976 = vmatpush2.msra.mxu0 0.0
        %977 = vmatprep.subr.mxu0 0.0
        %978 = vmatpush2.msra.mxu0 0.0
        %979 = vmatprep.subr.mxu0 0.0
        %980 = vmatpush2.msra.mxu0 0.0
        %981 = vmatprep.subr.mxu0 0.0
        %982 = vmatpush2.msra.mxu0 0.0
        %983 = vmatprep.subr.mxu0 0.0
        %984 = vmatpush2.msra.mxu0 0.0
        %985 = vmatprep.mubr.f32.mxu0 0.0
        %986 = vmatmul.mubr.f32.gmra.mxu0 %v919
        %v987 = vpop.f32.mrf.mxu0
        %v988 = vadd.f32 0.0, %v987
        %v989 = vpop.f32.mrf.mxu0
        %990 = vdwg.mxu0
        %v992 = vsel %vm792, %v839, 0
        %994 = vmatprep.subr.mxu0 0.0
        %995 = vmatpush1.msra.mxu0 0.0
        %996 = vmatprep.subr.mxu0 0.0
        %997 = vmatpush1.msra.mxu0 0.0
        %998 = vmatprep.subr.mxu0 0.0
        %999 = vmatpush1.msra.mxu0 0.0
        %1000 = vmatprep.subr.mxu0 0.0
        %1001 = vmatpush1.msra.mxu0 0.0
        %1002 = vmatprep.subr.mxu0 0.0
        %1003 = vmatpush1.msra.mxu0 0.0
        %1004 = vmatprep.subr.mxu0 0.0
        %1005 = vmatpush1.msra.mxu0 0.0
        %1006 = vmatprep.subr.mxu0 0.0
        %1007 = vmatpush1.msra.mxu0 0.0
        %1008 = vmatprep.subr.mxu0 0.0
        %1009 = vmatpush1.msra.mxu0 0.0
        %1010 = vmatprep.subr.mxu0 0.0
        %1011 = vmatpush1.msra.mxu0 0.0
        %1012 = vmatprep.subr.mxu0 0.0
        %1013 = vmatpush1.msra.mxu0 0.0
        %1014 = vmatprep.subr.mxu0 0.0
        %1015 = vmatpush1.msra.mxu0 0.0
        %1016 = vmatprep.subr.mxu0 0.0
        %1017 = vmatpush1.msra.mxu0 0.0
        %1018 = vmatprep.subr.mxu0 0.0
        %1019 = vmatpush1.msra.mxu0 0.0
        %1020 = vmatprep.subr.mxu0 0.0
        %1021 = vmatpush1.msra.mxu0 0.0
        %1022 = vmatprep.subr.mxu0 0.0
        %1023 = vmatpush1.msra.mxu0 0.0
        %1024 = vmatprep.subr.mxu0 0.0
        %1025 = vmatpush1.msra.mxu0 %v405
        %1026 = vmatprep.subr.mxu0 0.0
        %1027 = vmatpush2.msra.mxu0 0.0
        %1028 = vmatprep.subr.mxu0 0.0
        %1029 = vmatpush2.msra.mxu0 0.0
        %1030 = vmatprep.subr.mxu0 0.0
        %1031 = vmatpush2.msra.mxu0 0.0
        %1032 = vmatprep.subr.mxu0 0.0
        %1033 = vmatpush2.msra.mxu0 0.0
        %1034 = vmatprep.subr.mxu0 0.0
        %1035 = vmatpush2.msra.mxu0 0.0
        %1036 = vmatprep.subr.mxu0 0.0
        %1037 = vmatpush2.msra.mxu0 0.0
        %1038 = vmatprep.subr.mxu0 0.0
        %1039 = vmatpush2.msra.mxu0 0.0
        %1040 = vmatprep.subr.mxu0 0.0
        %1041 = vmatpush2.msra.mxu0 0.0
        %1042 = vmatprep.subr.mxu0 0.0
        %1043 = vmatpush2.msra.mxu0 0.0
        %1044 = vmatprep.subr.mxu0 0.0
        %1045 = vmatpush2.msra.mxu0 0.0
        %1046 = vmatprep.subr.mxu0 0.0
        %1047 = vmatpush2.msra.mxu0 0.0
        %1048 = vmatprep.subr.mxu0 0.0
        %1049 = vmatpush2.msra.mxu0 0.0
        %1050 = vmatprep.subr.mxu0 0.0
        %1051 = vmatpush2.msra.mxu0 0.0
        %1052 = vmatprep.subr.mxu0 0.0
        %1053 = vmatpush2.msra.mxu0 0.0
        %1054 = vmatprep.subr.mxu0 0.0
        %1055 = vmatpush2.msra.mxu0 0.0
        %1056 = vmatprep.subr.mxu0 0.0
        %1057 = vmatpush2.msra.mxu0 0.0
        %1058 = vmatprep.mubr.f32.mxu0 0.0
        %1059 = vmatmul.mubr.f32.gmra.mxu0 %v992
        %v1060 = vpop.f32.mrf.mxu0
        %v1061 = vadd.f32 0.0, %v1060
        %v1062 = vpop.f32.mrf.mxu0
        %1063 = vdwg.mxu0
        %v1065 = vsel %vm792, %v840, 0
        %1067 = vmatprep.subr.mxu0 0.0
        %1068 = vmatpush1.msra.mxu0 0.0
        %1069 = vmatprep.subr.mxu0 0.0
        %1070 = vmatpush1.msra.mxu0 0.0
        %1071 = vmatprep.subr.mxu0 0.0
        %1072 = vmatpush1.msra.mxu0 0.0
        %1073 = vmatprep.subr.mxu0 0.0
        %1074 = vmatpush1.msra.mxu0 0.0
        %1075 = vmatprep.subr.mxu0 0.0
        %1076 = vmatpush1.msra.mxu0 0.0
        %1077 = vmatprep.subr.mxu0 0.0
        %1078 = vmatpush1.msra.mxu0 0.0
        %1079 = vmatprep.subr.mxu0 0.0
        %1080 = vmatpush1.msra.mxu0 0.0
        %1081 = vmatprep.subr.mxu0 0.0
        %1082 = vmatpush1.msra.mxu0 0.0
        %1083 = vmatprep.subr.mxu0 0.0
        %1084 = vmatpush1.msra.mxu0 0.0
        %1085 = vmatprep.subr.mxu0 0.0
        %1086 = vmatpush1.msra.mxu0 0.0
        %1087 = vmatprep.subr.mxu0 0.0
        %1088 = vmatpush1.msra.mxu0 0.0
        %1089 = vmatprep.subr.mxu0 0.0
        %1090 = vmatpush1.msra.mxu0 0.0
        %1091 = vmatprep.subr.mxu0 0.0
        %1092 = vmatpush1.msra.mxu0 0.0
        %1093 = vmatprep.subr.mxu0 0.0
        %1094 = vmatpush1.msra.mxu0 0.0
        %1095 = vmatprep.subr.mxu0 0.0
        %1096 = vmatpush1.msra.mxu0 0.0
        %1097 = vmatprep.subr.mxu0 0.0
        %1098 = vmatpush1.msra.mxu0 %v406
        %1099 = vmatprep.subr.mxu0 0.0
        %1100 = vmatpush2.msra.mxu0 0.0
        %1101 = vmatprep.subr.mxu0 0.0
        %1102 = vmatpush2.msra.mxu0 0.0
        %1103 = vmatprep.subr.mxu0 0.0
        %1104 = vmatpush2.msra.mxu0 0.0
        %1105 = vmatprep.subr.mxu0 0.0
        %1106 = vmatpush2.msra.mxu0 0.0
        %1107 = vmatprep.subr.mxu0 0.0
        %1108 = vmatpush2.msra.mxu0 0.0
        %1109 = vmatprep.subr.mxu0 0.0
        %1110 = vmatpush2.msra.mxu0 0.0
        %1111 = vmatprep.subr.mxu0 0.0
        %1112 = vmatpush2.msra.mxu0 0.0
        %1113 = vmatprep.subr.mxu0 0.0
        %1114 = vmatpush2.msra.mxu0 0.0
        %1115 = vmatprep.subr.mxu0 0.0
        %1116 = vmatpush2.msra.mxu0 0.0
        %1117 = vmatprep.subr.mxu0 0.0
        %1118 = vmatpush2.msra.mxu0 0.0
        %1119 = vmatprep.subr.mxu0 0.0
        %1120 = vmatpush2.msra.mxu0 0.0
        %1121 = vmatprep.subr.mxu0 0.0
        %1122 = vmatpush2.msra.mxu0 0.0
        %1123 = vmatprep.subr.mxu0 0.0
        %1124 = vmatpush2.msra.mxu0 0.0
        %1125 = vmatprep.subr.mxu0 0.0
        %1126 = vmatpush2.msra.mxu0 0.0
        %1127 = vmatprep.subr.mxu0 0.0
        %1128 = vmatpush2.msra.mxu0 0.0
        %1129 = vmatprep.subr.mxu0 0.0
        %1130 = vmatpush2.msra.mxu0 0.0
        %1131 = vmatprep.mubr.f32.mxu0 0.0
        %1132 = vmatmul.mubr.f32.gmra.mxu0 %v1065
        %v1133 = vpop.f32.mrf.mxu0
        %v1134 = vadd.f32 0.0, %v1133
        %v1135 = vpop.f32.mrf.mxu0
        %1136 = vdwg.mxu0
        %v1137 = vld [vmem:[#allocation4] sm:$0xff]
        %v1138 = vld [vmem:[#allocation4 + $0x8] sm:$0xff]
        %v1139 = vld [vmem:[#allocation4 + $0x10] sm:$0xff]
        %v1140 = vld [vmem:[#allocation4 + $0x18] sm:$0xff]
        %v1141 = vld [vmem:[%s7] sm:$0x1]
        %v1143 = vlaneseq
        %v1144 = vshrl.u32 %v1143, 7
        %v1145 = vsub.s32 0, %v1144
        %v1146 = vrot.slane %v1141, %v1145
        %v1149 = vsel %vm418, %v915, 0
        %v1152 = vsel %vm418, %v988, 0
        %v1155 = vsel %vm418, %v1061, 0
        %v1158 = vsel %vm418, %v1134, 0
        %1160 = vmatprep.subr.mxu0 0.0
        %1161 = vmatpush1.msra.mxu0 0.0
        %1162 = vmatprep.subr.mxu0 0.0
        %1163 = vmatpush1.msra.mxu0 0.0
        %1164 = vmatprep.subr.mxu0 0.0
        %1165 = vmatpush1.msra.mxu0 0.0
        %1166 = vmatprep.subr.mxu0 0.0
        %1167 = vmatpush1.msra.mxu0 0.0
        %1168 = vmatprep.subr.mxu0 0.0
        %1169 = vmatpush1.msra.mxu0 0.0
        %1170 = vmatprep.subr.mxu0 0.0
        %1171 = vmatpush1.msra.mxu0 0.0
        %1172 = vmatprep.subr.mxu0 0.0
        %1173 = vmatpush1.msra.mxu0 0.0
        %1174 = vmatprep.subr.mxu0 0.0
        %1175 = vmatpush1.msra.mxu0 0.0
        %1176 = vmatprep.subr.mxu0 0.0
        %1177 = vmatpush1.msra.mxu0 0.0
        %1178 = vmatprep.subr.mxu0 0.0
        %1179 = vmatpush1.msra.mxu0 0.0
        %1180 = vmatprep.subr.mxu0 0.0
        %1181 = vmatpush1.msra.mxu0 0.0
        %1182 = vmatprep.subr.mxu0 0.0
        %1183 = vmatpush1.msra.mxu0 0.0
        %1184 = vmatprep.subr.mxu0 0.0
        %1185 = vmatpush1.msra.mxu0 %v1140
        %1186 = vmatprep.subr.mxu0 0.0
        %1187 = vmatpush1.msra.mxu0 %v1139
        %1188 = vmatprep.subr.mxu0 0.0
        %1189 = vmatpush1.msra.mxu0 %v1138
        %1190 = vmatprep.subr.mxu0 0.0
        %1191 = vmatpush1.msra.mxu0 %v1137
        %1192 = vmatprep.subr.mxu0 0.0
        %1193 = vmatpush2.msra.mxu0 0.0
        %1194 = vmatprep.subr.mxu0 0.0
        %1195 = vmatpush2.msra.mxu0 0.0
        %1196 = vmatprep.subr.mxu0 0.0
        %1197 = vmatpush2.msra.mxu0 0.0
        %1198 = vmatprep.subr.mxu0 0.0
        %1199 = vmatpush2.msra.mxu0 0.0
        %1200 = vmatprep.subr.mxu0 0.0
        %1201 = vmatpush2.msra.mxu0 0.0
        %1202 = vmatprep.subr.mxu0 0.0
        %1203 = vmatpush2.msra.mxu0 0.0
        %1204 = vmatprep.subr.mxu0 0.0
        %1205 = vmatpush2.msra.mxu0 0.0
        %1206 = vmatprep.subr.mxu0 0.0
        %1207 = vmatpush2.msra.mxu0 0.0
        %1208 = vmatprep.subr.mxu0 0.0
        %1209 = vmatpush2.msra.mxu0 0.0
        %1210 = vmatprep.subr.mxu0 0.0
        %1211 = vmatpush2.msra.mxu0 0.0
        %1212 = vmatprep.subr.mxu0 0.0
        %1213 = vmatpush2.msra.mxu0 0.0
        %1214 = vmatprep.subr.mxu0 0.0
        %1215 = vmatpush2.msra.mxu0 0.0
        %1216 = vmatprep.subr.mxu0 0.0
        %1217 = vmatpush2.msra.mxu0 0.0
        %1218 = vmatprep.subr.mxu0 0.0
        %1219 = vmatpush2.msra.mxu0 0.0
        %1220 = vmatprep.subr.mxu0 0.0
        %1221 = vmatpush2.msra.mxu0 0.0
        %1222 = vmatprep.subr.mxu0 0.0
        %1223 = vmatpush2.msra.mxu0 0.0
        %1224 = vmatprep.mubr.f32.mxu0 0.0
        %1225 = vmatmul.mubr.f32.gmra.mxu0 %v1149
        %v1226 = vpop.f32.mrf.mxu0
        %v1227 = vadd.f32 %v1146, %v1226
        %v1228 = vpop.f32.mrf.mxu0
        %1229 = vmatprep.mubr.f32.mxu0 0.0
        %1230 = vmatmul.mubr.f32.gmra.mxu0 %v1152
        %v1231 = vpop.f32.mrf.mxu0
        %v1232 = vadd.f32 %v1146, %v1231
        %v1233 = vpop.f32.mrf.mxu0
        %1234 = vmatprep.mubr.f32.mxu0 0.0
        %1235 = vmatmul.mubr.f32.gmra.mxu0 %v1155
        %v1236 = vpop.f32.mrf.mxu0
        %v1237 = vadd.f32 %v1146, %v1236
        %v1238 = vpop.f32.mrf.mxu0
        %1239 = vmatprep.mubr.f32.mxu0 0.0
        %1240 = vmatmul.mubr.f32.gmra.mxu0 %v1158
        %v1241 = vpop.f32.mrf.mxu0
        %v1242 = vadd.f32 %v1146, %v1241
        %v1243 = vpop.f32.mrf.mxu0
        %1244 = vdwg.mxu0
        %1245 = vst.msk [vmem:[%s395] sm:$0xff] %vm418, %v1227
        %1246 = vst.msk [vmem:[%s395 + $0x8] sm:$0xff] %vm418, %v1232
        %1247 = vst.msk [vmem:[%s395 + $0x10] sm:$0xff] %vm418, %v1237
        %1248 = vst.msk [vmem:[%s395 + $0x18] sm:$0xff] %vm418, %v1242
        %s1249 = smul.u32 4, %s25
        %p1250 = scmp.lt.s32.totalorder %s1249, 7
        %s1251 = scalar_select %p1250, %s1249, 7
        %s1252 = smul.addr %s1251, 8
        %s1253 = scalar_lea.vmem %s8, %s1252
        %s1254 = smul.u32 4, %s25
        %p1255 = scmp.lt.s32.totalorder %s1254, 7
        %s1256 = scalar_select %p1255, %s1254, 7
        %s1257 = smul.addr %s1256, 8
        %s1258 = scalar_lea.vmem %s9, %s1257
        // Predicated region
        $region61: #{tpu_custom_call.1} parent=51 // pred_check
          %p1259 = pneg %p221
        $region62: #{tpu_custom_call.1} parent=51 // pred_check_branch
          %1261 = sbr.rel (%p1259) target = $region64
        $region63: #{tpu_custom_call.1} parent=51 // pred_region
          %s1262 = smul.u32 4, %s25
        $region64: #{tpu_custom_call.1} parent=51 // pred_fallthru
          _
        // Predicated region
        $region65: #{tpu_custom_call.1} parent=51 // pred_check
          %p1263 = pneg %p247
        $region66: #{tpu_custom_call.1} parent=51 // pred_check_branch
          %1265 = sbr.rel (%p1263) target = $region68
        $region67: #{tpu_custom_call.1} parent=51 // pred_region
          %s1266 = smul.u32 4, %s25
        $region68: #{tpu_custom_call.1} parent=51 // pred_fallthru
          _
      $region52: #{tpu_custom_call.1} parent=5 // pred_fallthru
        _
      %p1267 = scmp.le.s32.totalorder 2, %s20
      // Predicated region
      $region69: #{tpu_custom_call.1} parent=5 // pred_check
        %p1268 = pneg %p1267
      $region70: #{tpu_custom_call.1} parent=5 // pred_check_branch
        %1270 = sbr.rel (%p1268) target = $region72
      $region71: #{tpu_custom_call.1} parent=5 // pred_region
        %s1271 = ssub.s32 %s20, 2
        // Predicated region
        $region73: #{tpu_custom_call.1} parent=71 // pred_check
          %p1272 = pneg %p227
        $region74: #{tpu_custom_call.1} parent=71 // pred_check_branch
          %1274 = sbr.rel (%p1272) target = $region76
        $region75: #{tpu_custom_call.1} parent=71 // pred_region
          %s1275 = smul.u32 4, %s26
          %p1276 = scmp.lt.s32.totalorder %s1275, 7
          %s1277 = scalar_select %p1276, %s1275, 7
          %s1278 = smul.addr %s1277, 8
          %s1279 = scalar_lea.vmem %s8, %s1278
        $region76: #{tpu_custom_call.1} parent=71 // pred_fallthru
          _
        // Predicated region
        $region77: #{tpu_custom_call.1} parent=71 // pred_check
          %p1280 = pneg %p253
        $region78: #{tpu_custom_call.1} parent=71 // pred_check_branch
          %1282 = sbr.rel (%p1280) target = $region80
        $region79: #{tpu_custom_call.1} parent=71 // pred_region
          %s1283 = smul.u32 4, %s26
          %p1284 = scmp.lt.s32.totalorder %s1283, 7
          %s1285 = scalar_select %p1284, %s1283, 7
          %s1286 = smul.addr %s1285, 8
          %s1287 = scalar_lea.vmem %s9, %s1286
        $region80: #{tpu_custom_call.1} parent=71 // pred_fallthru
          _
      $region72: #{tpu_custom_call.1} parent=5 // pred_fallthru
        _
    $region6: #{tpu_custom_call.1} parent=1 // loop_footer
      %s24 = sadd.s32 1, %s20
    $region7: #{tpu_custom_call.1} parent=1 // loop_footer_branch
      %19 = sbr.rel target = $region3
    $region8: #{tpu_custom_call.1} parent=1 // loop_exit
      _
    %1288 = vsyncpa [#allocation3], 1
    %s1289 = scalar_lea.sflag [#allocation3], 1
    %1290 = vsyncpa %s1289, 1
    %1291 = vsyncpa [#allocation5], 1

// kernel: tpu_custom_call.1
$region0: #{tpu_custom_call.1}
  #allocation0 [shape = 'u32[]', space=smem, size = 0x4, offset = 0x4, fixed_abs, tag = 'smem constant byte address 0x4 - core index']
  #allocation1 [shape = 'u32[144,128]{1,0:T(1,128)}', space=vmem, size = 0x12000, scoped, tag = 'internal scratch']
  %s0 = inlined_call_operand.hbm [shape: f32[8,8,32], index: 0, kind: input, shape index: {}]
  %s1 = inlined_call_operand.vmem [shape: f32[8,1,8], index: 1, kind: input, shape index: {}]
  %s2 = inlined_call_operand.vmem [shape: f32[32,32], index: 2, kind: input, shape index: {}]
  %s3 = inlined_call_operand.vmem [shape: f32[1,32], index: 3, kind: input, shape index: {}]
  %s4 = inlined_call_operand.vmem [shape: f32[32,8], index: 4, kind: input, shape index: {}]
  %s5 = inlined_call_operand.vmem [shape: f32[1,8], index: 5, kind: input, shape index: {}]
  %s6 = inlined_call_operand.hbm [shape: f32[32,32], index: 6, kind: input, shape index: {}]
  %s7 = inlined_call_operand.vmem [shape: f32[1,32], index: 7, kind: input, shape index: {}]
  %s8 = inlined_call_operand.vmem [shape: f32[64,32], index: 8, kind: output, shape index: {0}]
  %s9 = inlined_call_operand.vmem [shape: f32[64,8], index: 9, kind: output, shape index: {1}]
  %10 = xla_tuple %s8, %s9
  %s11 = sld [smem:[#allocation0]]
  $region81: #{tpu_custom_call.1} parent=0
    _
  %s13 = ssub.s32 1, %s11
  %s14 = scalar_select 0, %s13, %s11
  $region1: #{tpu_custom_call.1} parent=0
    #allocation2 [shape = 'u8[32768]{0}', space=vmem, size = 0x8000, scoped, tag = 'input window, operand 0']
    #allocation3 [shape = 's32[2]{0}', space=sflag, size = 0x8, scoped, tag = 'scoped memory for tpu_custom_call.1']
    #allocation4 [shape = 'u8[16384]{0}', space=vmem, size = 0x4000, scoped, tag = 'input window, operand 6, single buffered']
    #allocation5 [shape = 's32[1]{0}', space=sflag, size = 0x4, scoped, tag = 'scoped memory for tpu_custom_call.1']
    %15 = vsyncpa [#allocation3], 0
    %s16 = scalar_lea.sflag [#allocation3], 1
    %17 = vsyncpa %s16, 0
    %18 = vsyncpa [#allocation5], 0
    loop: start=0, step=1, limit=4
    $region2: #{tpu_custom_call.1} parent=1 // loop_pre_header
      _
    $region3: #{tpu_custom_call.1} parent=1 // loop_header
      %s20 = sphi 0, %s24
      %p21 = scmp.ge.s32.totalorder %s20, 4
      %s30 = sphi 0, %s32
      %s33 = sphi 0, %s30
      %s34 = sphi 0, %s33
      %s50 = sphi 0, %s34
      %s56 = sphi 0, %s58
      %s59 = sphi 0, %s56
      %s60 = sphi 0, %s59
      %s76 = sphi 0, %s60
      %s80 = sphi 0, %s80
      %s82 = sphi 0, %s80
      %s83 = sphi 0, %s82
      %s97 = sphi 0, %s83
      %s101 = sphi 0, %s101
      %s103 = sphi 0, %s101
      %s104 = sphi 0, %s103
      %s118 = sphi 0, %s104
      %s122 = sphi 0, %s122
      %s124 = sphi 0, %s122
      %s125 = sphi 0, %s124
      %s139 = sphi 0, %s125
      %s143 = sphi 0, %s143
      %s145 = sphi 0, %s143
      %s146 = sphi 0, %s145
      %s160 = sphi 0, %s146
      %s164 = sphi 0, %s164
      %s166 = sphi 0, %s164
      %s167 = sphi 0, %s166
      %s181 = sphi 0, %s167
      %s185 = sphi 0, %s185
      %s187 = sphi 0, %s185
      %s188 = sphi 0, %s187
      %s202 = sphi 0, %s188
      %s208 = sphi 0, %s210
      %s211 = sphi 0, %s208
      %s212 = sphi 0, %s211
      %s228 = sphi 0, %s212
      %s234 = sphi 0, %s236
      %s237 = sphi 0, %s234
      %s238 = sphi 0, %s237
      %s254 = sphi 0, %s238
    $region4: #{tpu_custom_call.1} parent=1 // loop_header_branch
      %23 = sbr.rel (%p21) target = $region8
    $region5: #{tpu_custom_call.1} parent=1 // loop_body
      %s25 = ssub.s32 %s20, 1
      %s26 = ssub.s32 %s20, 2
      %s27 = sadd.s32 %s20, 1
      %s28 = ssub.s32 %s20, %s27
      %p29 = scmp.eq.s32.totalorder %s28, 0
      %s31 = sadd.s32 %s30, 1
      %s32 = scalar_select %p29, %s30, %s31
      %p35 = pneg %p29
      %p36 = scmp.eq.s32.totalorder %s20, 1
      %p37 = por %p35, %p36
      %p38 = scmp.ne.s32.totalorder %s30, %s33
      %p39 = scmp.eq.s32.totalorder %s20, 0
      %p40 = por %p38, %p39
      %p41 = scmp.ne.s32.totalorder %s30, %s33
      %p42 = scmp.eq.s32.totalorder %s25, 1
      %p43 = por %p41, %p42
      %p44 = scmp.ne.s32.totalorder %s33, %s34
      %p45 = scmp.eq.s32.totalorder %s25, 0
      %p46 = por %p44, %p45
      %p47 = scmp.ne.s32.totalorder %s33, %s34
      %p48 = scmp.eq.s32.totalorder %s26, 1
      %p49 = por %p47, %p48
      %p51 = scmp.ne.s32.totalorder %s34, %s50
      %p52 = scmp.eq.s32.totalorder %s26, 0
      %p53 = por %p51, %p52
      %s54 = ssub.s32 %s20, %s27
      %p55 = scmp.eq.s32.totalorder %s54, 0
      %s57 = sadd.s32 %s56, 1
      %s58 = scalar_select %p55, %s56, %s57
      %p61 = pneg %p55
      %p62 = scmp.eq.s32.totalorder %s20, 1
      %p63 = por %p61, %p62
      %p64 = scmp.ne.s32.totalorder %s56, %s59
      %p65 = scmp.eq.s32.totalorder %s20, 0
      %p66 = por %p64, %p65
      %p67 = scmp.ne.s32.totalorder %s56, %s59
      %p68 = scmp.eq.s32.totalorder %s25, 1
      %p69 = por %p67, %p68
      %p70 = scmp.ne.s32.totalorder %s59, %s60
      %p71 = scmp.eq.s32.totalorder %s25, 0
      %p72 = por %p70, %p71
      %p73 = scmp.ne.s32.totalorder %s59, %s60
      %p74 = scmp.eq.s32.totalorder %s26, 1
      %p75 = por %p73, %p74
      %p77 = scmp.ne.s32.totalorder %s60, %s76
      %p78 = scmp.eq.s32.totalorder %s26, 0
      %p79 = por %p77, %p78
      %s81 = sadd.s32 %s80, 1
      %p84 = scmp.eq.s32.totalorder %s20, 1
      %p85 = scmp.ne.s32.totalorder %s80, %s82
      %p86 = scmp.eq.s32.totalorder %s20, 0
      %p87 = por %p85, %p86
      %p88 = scmp.ne.s32.totalorder %s80, %s82
      %p89 = scmp.eq.s32.totalorder %s25, 1
      %p90 = por %p88, %p89
      %p91 = scmp.ne.s32.totalorder %s82, %s83
      %p92 = scmp.eq.s32.totalorder %s25, 0
      %p93 = por %p91, %p92
      %p94 = scmp.ne.s32.totalorder %s82, %s83
      %p95 = scmp.eq.s32.totalorder %s26, 1
      %p96 = por %p94, %p95
      %p98 = scmp.ne.s32.totalorder %s83, %s97
      %p99 = scmp.eq.s32.totalorder %s26, 0
      %p100 = por %p98, %p99
      %s102 = sadd.s32 %s101, 1
      %p105 = scmp.eq.s32.totalorder %s20, 1
      %p106 = scmp.ne.s32.totalorder %s101, %s103
      %p107 = scmp.eq.s32.totalorder %s20, 0
      %p108 = por %p106, %p107
      %p109 = scmp.ne.s32.totalorder %s101, %s103
      %p110 = scmp.eq.s32.totalorder %s25, 1
      %p111 = por %p109, %p110
      %p112 = scmp.ne.s32.totalorder %s103, %s104
      %p113 = scmp.eq.s32.totalorder %s25, 0
      %p114 = por %p112, %p113
      %p115 = scmp.ne.s32.totalorder %s103, %s104
      %p116 = scmp.eq.s32.totalorder %s26, 1
      %p117 = por %p115, %p116
      %p119 = scmp.ne.s32.totalorder %s104, %s118
      %p120 = scmp.eq.s32.totalorder %s26, 0
      %p121 = por %p119, %p120
      %s123 = sadd.s32 %s122, 1
      %p126 = scmp.eq.s32.totalorder %s20, 1
      %p127 = scmp.ne.s32.totalorder %s122, %s124
      %p128 = scmp.eq.s32.totalorder %s20, 0
      %p129 = por %p127, %p128
      %p130 = scmp.ne.s32.totalorder %s122, %s124
      %p131 = scmp.eq.s32.totalorder %s25, 1
      %p132 = por %p130, %p131
      %p133 = scmp.ne.s32.totalorder %s124, %s125
      %p134 = scmp.eq.s32.totalorder %s25, 0
      %p135 = por %p133, %p134
      %p136 = scmp.ne.s32.totalorder %s124, %s125
      %p137 = scmp.eq.s32.totalorder %s26, 1
      %p138 = por %p136, %p137
      %p140 = scmp.ne.s32.totalorder %s125, %s139
      %p141 = scmp.eq.s32.totalorder %s26, 0
      %p142 = por %p140, %p141
      %s144 = sadd.s32 %s143, 1
      %p147 = scmp.eq.s32.totalorder %s20, 1
      %p148 = scmp.ne.s32.totalorder %s143, %s145
      %p149 = scmp.eq.s32.totalorder %s20, 0
      %p150 = por %p148, %p149
      %p151 = scmp.ne.s32.totalorder %s143, %s145
      %p152 = scmp.eq.s32.totalorder %s25, 1
      %p153 = por %p151, %p152
      %p154 = scmp.ne.s32.totalorder %s145, %s146
      %p155 = scmp.eq.s32.totalorder %s25, 0
      %p156 = por %p154, %p155
      %p157 = scmp.ne.s32.totalorder %s145, %s146
      %p158 = scmp.eq.s32.totalorder %s26, 1
      %p159 = por %p157, %p158
      %p161 = scmp.ne.s32.totalorder %s146, %s160
      %p162 = scmp.eq.s32.totalorder %s26, 0
      %p163 = por %p161, %p162
      %s165 = sadd.s32 %s164, 1
      %p168 = scmp.eq.s32.totalorder %s20, 1
      %p169 = scmp.ne.s32.totalorder %s164, %s166
      %p170 = scmp.eq.s32.totalorder %s20, 0
      %p171 = por %p169, %p170
      %p172 = scmp.ne.s32.totalorder %s164, %s166
      %p173 = scmp.eq.s32.totalorder %s25, 1
      %p174 = por %p172, %p173
      %p175 = scmp.ne.s32.totalorder %s166, %s167
      %p176 = scmp.eq.s32.totalorder %s25, 0
      %p177 = por %p175, %p176
      %p178 = scmp.ne.s32.totalorder %s166, %s167
      %p179 = scmp.eq.s32.totalorder %s26, 1
      %p180 = por %p178, %p179
      %p182 = scmp.ne.s32.totalorder %s167, %s181
      %p183 = scmp.eq.s32.totalorder %s26, 0
      %p184 = por %p182, %p183
      %s186 = sadd.s32 %s185, 1
      %p189 = scmp.eq.s32.totalorder %s20, 1
      %p190 = scmp.ne.s32.totalorder %s185, %s187
      %p191 = scmp.eq.s32.totalorder %s20, 0
      %p192 = por %p190, %p191
      %p193 = scmp.ne.s32.totalorder %s185, %s187
      %p194 = scmp.eq.s32.totalorder %s25, 1
      %p195 = por %p193, %p194
      %p196 = scmp.ne.s32.totalorder %s187, %s188
      %p197 = scmp.eq.s32.totalorder %s25, 0
      %p198 = por %p196, %p197
      %p199 = scmp.ne.s32.totalorder %s187, %s188
      %p200 = scmp.eq.s32.totalorder %s26, 1
      %p201 = por %p199, %p200
      %p203 = scmp.ne.s32.totalorder %s188, %s202
      %p204 = scmp.eq.s32.totalorder %s26, 0
      %p205 = por %p203, %p204
      %s206 = ssub.s32 %s20, %s27
      %p207 = scmp.eq.s32.totalorder %s206, 0
      %s209 = sadd.s32 %s208, 1
      %s210 = scalar_select %p207, %s208, %s209
      %p213 = pneg %p207
      %p214 = scmp.eq.s32.totalorder %s20, 1
      %p215 = por %p213, %p214
      %p216 = scmp.ne.s32.totalorder %s208, %s211
      %p217 = scmp.eq.s32.totalorder %s20, 0
      %p218 = por %p216, %p217
      %p219 = scmp.ne.s32.totalorder %s208, %s211
      %p220 = scmp.eq.s32.totalorder %s25, 1
      %p221 = por %p219, %p220
      %p222 = scmp.ne.s32.totalorder %s211, %s212
      %p223 = scmp.eq.s32.totalorder %s25, 0
      %p224 = por %p222, %p223
      %p225 = scmp.ne.s32.totalorder %s211, %s212
      %p226 = scmp.eq.s32.totalorder %s26, 1
      %p227 = por %p225, %p226
      %p229 = scmp.ne.s32.totalorder %s212, %s228
      %p230 = scmp.eq.s32.totalorder %s26, 0
      %p231 = por %p229, %p230
      %s232 = ssub.s32 %s20, %s27
      %p233 = scmp.eq.s32.totalorder %s232, 0
      %s235 = sadd.s32 %s234, 1
      %s236 = scalar_select %p233, %s234, %s235
      %p239 = pneg %p233
      %p240 = scmp.eq.s32.totalorder %s20, 1
      %p241 = por %p239, %p240
      %p242 = scmp.ne.s32.totalorder %s234, %s237
      %p243 = scmp.eq.s32.totalorder %s20, 0
      %p244 = por %p242, %p243
      %p245 = scmp.ne.s32.totalorder %s234, %s237
      %p246 = scmp.eq.s32.totalorder %s25, 1
      %p247 = por %p245, %p246
      %p248 = scmp.ne.s32.totalorder %s237, %s238
      %p249 = scmp.eq.s32.totalorder %s25, 0
      %p250 = por %p248, %p249
      %p251 = scmp.ne.s32.totalorder %s237, %s238
      %p252 = scmp.eq.s32.totalorder %s26, 1
      %p253 = por %p251, %p252
      %p255 = scmp.ne.s32.totalorder %s238, %s254
      %p256 = scmp.eq.s32.totalorder %s26, 0
      %p257 = por %p255, %p256
      %p258 = scmp.le.s32.totalorder 1, %s20
      %p259 = scmp.lt.s32.totalorder %s20, 3
      %p260 = pnand %p258, %p259
      %p261 = pneg %p260
      // Predicated region
      $region9: #{tpu_custom_call.1} parent=5 // pred_check
        _
      $region10: #{tpu_custom_call.1} parent=5 // pred_check_branch
        %263 = sbr.rel (%p260) target = $region12
      $region11: #{tpu_custom_call.1} parent=5 // pred_region
        %s264 = ssub.s32 %s20, 1
        // Predicated region
        $region13: #{tpu_custom_call.1} parent=11 // pred_check
          %p265 = pneg %p93
        $region14: #{tpu_custom_call.1} parent=11 // pred_check_branch
          %267 = sbr.rel (%p265) target = $region16
        $region15: #{tpu_custom_call.1} parent=11 // pred_region
          _
        $region16: #{tpu_custom_call.1} parent=11 // pred_fallthru
          _
        // Predicated region
        $region17: #{tpu_custom_call.1} parent=11 // pred_check
          %p268 = pneg %p114
        $region18: #{tpu_custom_call.1} parent=11 // pred_check_branch
          %270 = sbr.rel (%p268) target = $region20
        $region19: #{tpu_custom_call.1} parent=11 // pred_region
          _
        $region20: #{tpu_custom_call.1} parent=11 // pred_fallthru
          _
        // Predicated region
        $region21: #{tpu_custom_call.1} parent=11 // pred_check
          %p271 = pneg %p135
        $region22: #{tpu_custom_call.1} parent=11 // pred_check_branch
          %273 = sbr.rel (%p271) target = $region24
        $region23: #{tpu_custom_call.1} parent=11 // pred_region
          _
        $region24: #{tpu_custom_call.1} parent=11 // pred_fallthru
          _
        // Predicated region
        $region25: #{tpu_custom_call.1} parent=11 // pred_check
          %p274 = pneg %p156
        $region26: #{tpu_custom_call.1} parent=11 // pred_check_branch
          %276 = sbr.rel (%p274) target = $region28
        $region27: #{tpu_custom_call.1} parent=11 // pred_region
          _
        $region28: #{tpu_custom_call.1} parent=11 // pred_fallthru
          _
        // Predicated region
        $region29: #{tpu_custom_call.1} parent=11 // pred_check
          %p277 = pneg %p177
        $region30: #{tpu_custom_call.1} parent=11 // pred_check_branch
          %279 = sbr.rel (%p277) target = $region32
        $region31: #{tpu_custom_call.1} parent=11 // pred_region
          %s281 = ssub.s32 512, 512
          %282 = vsyncadd [#allocation5], %s281
          %s283 = sshll.u32 [#allocation4], 4
          %s284 = int_to_ptr.vmem [resolvable:$true] %s283
          %289 = dma.hbm_to_vmem [thread:$0]  %s6, 512, %s284, [#allocation5], 128, 128, 8
        $region32: #{tpu_custom_call.1} parent=11 // pred_fallthru
          _
        // Predicated region
        $region33: #{tpu_custom_call.1} parent=11 // pred_check
          %p290 = pneg %p198
        $region34: #{tpu_custom_call.1} parent=11 // pred_check_branch
          %292 = sbr.rel (%p290) target = $region36
        $region35: #{tpu_custom_call.1} parent=11 // pred_region
          _
        $region36: #{tpu_custom_call.1} parent=11 // pred_fallthru
          _
      $region12: #{tpu_custom_call.1} parent=5 // pred_fallthru
        _
      %p293 = scmp.lt.s32.totalorder %s20, 2
      // Predicated region
      $region37: #{tpu_custom_call.1} parent=5 // pred_check
        %p294 = pneg %p293
      $region38: #{tpu_custom_call.1} parent=5 // pred_check_branch
        %296 = sbr.rel (%p294) target = $region40
      $region39: #{tpu_custom_call.1} parent=5 // pred_region
        // Predicated region
        $region41: #{tpu_custom_call.1} parent=39 // pred_check
          %p297 = pneg %p40
        $region42: #{tpu_custom_call.1} parent=39 // pred_check_branch
          %299 = sbr.rel (%p297) target = $region44
        $region43: #{tpu_custom_call.1} parent=39 // pred_region
          %s300 = sand.u32 %s30, 1
          %s301 = scalar_lea.sflag [#allocation3], %s300
          %s302 = sand.u32 %s30, 1
          %s303 = smul.addr %s302, 32
          %s304 = scalar_lea.vmem [#allocation2], %s303
          %s305 = smul.u32 4, %s20
          %s307 = ssub.s32 512, 512
          %308 = vsyncadd %s301, %s307
          %s309 = smul.addr %s305, 128
          %s310 = scalar_lea.hbm %s0, %s309
          %s311 = sshll.u32 %s304, 4
          %s312 = int_to_ptr.vmem [resolvable:$true] %s311
          %317 = dma.hbm_to_vmem [thread:$0]  %s310, 512, %s312, %s301, 128, 128, 8
        $region44: #{tpu_custom_call.1} parent=39 // pred_fallthru
          _
        // Predicated region
        $region45: #{tpu_custom_call.1} parent=39 // pred_check
          %p318 = pneg %p66
        $region46: #{tpu_custom_call.1} parent=39 // pred_check_branch
          %320 = sbr.rel (%p318) target = $region48
        $region47: #{tpu_custom_call.1} parent=39 // pred_region
          %s321 = smul.u32 4, %s20
          %p322 = scmp.lt.s32.totalorder %s321, 7
          %s323 = scalar_select %p322, %s321, 7
          %s324 = scalar_lea.vmem %s1, %s323
          %s325 = smul.u32 4, %s20
        $region48: #{tpu_custom_call.1} parent=39 // pred_fallthru
          _
      $region40: #{tpu_custom_call.1} parent=5 // pred_fallthru
        _
      %p326 = scmp.le.s32.totalorder 1, %s20
      %p327 = scmp.lt.s32.totalorder %s20, 3
      %p328 = pnand %p326, %p327
      %p329 = pneg %p328
      // Predicated region
      $region49: #{tpu_custom_call.1} parent=5 // pred_check
        _
      $region50: #{tpu_custom_call.1} parent=5 // pred_check_branch
        %331 = sbr.rel (%p328) target = $region52
      $region51: #{tpu_custom_call.1} parent=5 // pred_region
        %s332 = ssub.s32 %s20, 1
        %s333 = sand.u32 %s33, 1
        %s334 = scalar_lea.sflag [#allocation3], %s333
        %s335 = sand.u32 %s33, 1
        %s336 = smul.addr %s335, 32
        %s337 = scalar_lea.vmem [#allocation2], %s336
        // Predicated region
        $region53: #{tpu_custom_call.1} parent=51 // pred_check
          %p338 = pneg %p46
        $region54: #{tpu_custom_call.1} parent=51 // pred_check_branch
          %340 = sbr.rel (%p338) target = $region56
        $region55: #{tpu_custom_call.1} parent=51 // pred_region
          %341 = dma.done %s334, 512
        $region56: #{tpu_custom_call.1} parent=51 // pred_fallthru
          _
        // Predicated region
        $region57: #{tpu_custom_call.1} parent=51 // pred_check
          %p342 = pneg %p177
        $region58: #{tpu_custom_call.1} parent=51 // pred_check_branch
          %344 = sbr.rel (%p342) target = $region60
        $region59: #{tpu_custom_call.1} parent=51 // pred_region
          %345 = dma.done [#allocation5], 512
        $region60: #{tpu_custom_call.1} parent=51 // pred_fallthru
          _
        %s346 = sand.u32 %s33, 1
        %s347 = scalar_lea.sflag [#allocation3], %s346
        %s348 = sand.u32 %s33, 1
        %s349 = smul.addr %s348, 32
        %s350 = scalar_lea.vmem [#allocation2], %s349
        %p351 = pneg %p46
        %p352 = pneg %p43
        %s353 = smul.u32 4, %s25
        %p354 = scmp.lt.s32.totalorder %s353, 7
        %s355 = scalar_select %p354, %s353, 7
        %s356 = scalar_lea.vmem %s1, %s355
        %p357 = pneg %p72
        %p358 = pneg %p69
        %p359 = pneg %p93
        %p360 = pneg %p90
        %p361 = pneg %p114
        %p362 = pneg %p111
        %p363 = pneg %p135
        %p364 = pneg %p132
        %p365 = pneg %p156
        %p366 = pneg %p153
        %p367 = pneg %p177
        %p368 = pneg %p174
        %p369 = pneg %p198
        %p370 = pneg %p195
        %p371 = pneg %p224
        %p372 = pneg %p221
        %s373 = smul.u32 4, %s25
        %p374 = scmp.lt.s32.totalorder %s373, 7
        %s375 = scalar_select %p374, %s373, 7
        %s376 = smul.addr %s375, 8
        %s377 = scalar_lea.vmem %s8, %s376
        %p378 = pneg %p250
        %p379 = pneg %p247
        %s380 = smul.u32 4, %s25
        %p381 = scmp.lt.s32.totalorder %s380, 7
        %s382 = scalar_select %p381, %s380, 7
        %s383 = smul.addr %s382, 8
        %s384 = scalar_lea.vmem %s9, %s383
        %s385 = smul.u32 4, %s25
        %s386 = smul.u32 4, %s25
        %p387 = scmp.lt.s32.totalorder %s386, 7
        %s388 = scalar_select %p387, %s386, 7
        %s389 = scalar_lea.vmem %s1, %s388
        %s390 = smul.u32 4, %s25
        %s391 = smul.u32 4, %s25
        %p392 = scmp.lt.s32.totalorder %s391, 7
        %s393 = scalar_select %p392, %s391, 7
        %s394 = smul.addr %s393, 8
        %s395 = scalar_lea.vmem %s8, %s394
        %s396 = smul.u32 4, %s25
        %s397 = smul.u32 4, %s25
        %p398 = scmp.lt.s32.totalorder %s397, 7
        %s399 = scalar_select %p398, %s397, 7
        %s400 = smul.addr %s399, 8
        %s401 = scalar_lea.vmem %s9, %s400
        %s402 = smul.u32 4, %s25
        %v403 = vld [vmem:[%s337] sm:$0xff]
        %v404 = vld [vmem:[%s337 + $0x8] sm:$0xff]
        %v405 = vld [vmem:[%s337 + $0x10] sm:$0xff]
        %v406 = vld [vmem:[%s337 + $0x18] sm:$0xff]
        %v407 = vld [vmem:[%s2] sm:$0xff]
        %v408 = vld [vmem:[%s2 + $0x8] sm:$0xff]
        %v409 = vld [vmem:[%s2 + $0x10] sm:$0xff]
        %v410 = vld [vmem:[%s2 + $0x18] sm:$0xff]
        %v411 = vld [vmem:[%s3] sm:$0x1]
        %v413 = vlaneseq
        %v414 = vshrl.u32 %v413, 7
        %v415 = vsub.s32 0, %v414
        %v416 = vrot.slane %v411, %v415
        %vm418 = vcmask 261120
        %v420 = vsel %vm418, %v403, 0
        %v423 = vsel %vm418, %v404, 0
        %v426 = vsel %vm418, %v405, 0
        %v429 = vsel %vm418, %v406, 0
        %431 = vmatprep.subr.mxu0 0.0
        %432 = vmatpush1.msra.mxu0 0.0
        %433 = vmatprep.subr.mxu0 0.0
        %434 = vmatpush1.msra.mxu0 0.0
        %435 = vmatprep.subr.mxu0 0.0
        %436 = vmatpush1.msra.mxu0 0.0
        %437 = vmatprep.subr.mxu0 0.0
        %438 = vmatpush1.msra.mxu0 0.0
        %439 = vmatprep.subr.mxu0 0.0
        %440 = vmatpush1.msra.mxu0 0.0
        %441 = vmatprep.subr.mxu0 0.0
        %442 = vmatpush1.msra.mxu0 0.0
        %443 = vmatprep.subr.mxu0 0.0
        %444 = vmatpush1.msra.mxu0 0.0
        %445 = vmatprep.subr.mxu0 0.0
        %446 = vmatpush1.msra.mxu0 0.0
        %447 = vmatprep.subr.mxu0 0.0
        %448 = vmatpush1.msra.mxu0 0.0
        %449 = vmatprep.subr.mxu0 0.0
        %450 = vmatpush1.msra.mxu0 0.0
        %451 = vmatprep.subr.mxu0 0.0
        %452 = vmatpush1.msra.mxu0 0.0
        %453 = vmatprep.subr.mxu0 0.0
        %454 = vmatpush1.msra.mxu0 0.0
        %455 = vmatprep.subr.mxu0 0.0
        %456 = vmatpush1.msra.mxu0 %v410
        %457 = vmatprep.subr.mxu0 0.0
        %458 = vmatpush1.msra.mxu0 %v409
        %459 = vmatprep.subr.mxu0 0.0
        %460 = vmatpush1.msra.mxu0 %v408
        %461 = vmatprep.subr.mxu0 0.0
        %462 = vmatpush1.msra.mxu0 %v407
        %463 = vmatprep.subr.mxu0 0.0
        %464 = vmatpush2.msra.mxu0 0.0
        %465 = vmatprep.subr.mxu0 0.0
        %466 = vmatpush2.msra.mxu0 0.0
        %467 = vmatprep.subr.mxu0 0.0
        %468 = vmatpush2.msra.mxu0 0.0
        %469 = vmatprep.subr.mxu0 0.0
        %470 = vmatpush2.msra.mxu0 0.0
        %471 = vmatprep.subr.mxu0 0.0
        %472 = vmatpush2.msra.mxu0 0.0
        %473 = vmatprep.subr.mxu0 0.0
        %474 = vmatpush2.msra.mxu0 0.0
        %475 = vmatprep.subr.mxu0 0.0
        %476 = vmatpush2.msra.mxu0 0.0
        %477 = vmatprep.subr.mxu0 0.0
        %478 = vmatpush2.msra.mxu0 0.0
        %479 = vmatprep.subr.mxu0 0.0
        %480 = vmatpush2.msra.mxu0 0.0
        %481 = vmatprep.subr.mxu0 0.0
        %482 = vmatpush2.msra.mxu0 0.0
        %483 = vmatprep.subr.mxu0 0.0
        %484 = vmatpush2.msra.mxu0 0.0
        %485 = vmatprep.subr.mxu0 0.0
        %486 = vmatpush2.msra.mxu0 0.0
        %487 = vmatprep.subr.mxu0 0.0
        %488 = vmatpush2.msra.mxu0 0.0
        %489 = vmatprep.subr.mxu0 0.0
        %490 = vmatpush2.msra.mxu0 0.0
        %491 = vmatprep.subr.mxu0 0.0
        %492 = vmatpush2.msra.mxu0 0.0
        %493 = vmatprep.subr.mxu0 0.0
        %494 = vmatpush2.msra.mxu0 0.0
        %495 = vmatprep.mubr.f32.mxu0 0.0
        %496 = vmatmul.mubr.f32.gmra.mxu0 %v420
        %v497 = vpop.f32.mrf.mxu0
        %v498 = vadd.f32 %v416, %v497
        %v499 = vpop.f32.mrf.mxu0
        %500 = vmatprep.mubr.f32.mxu0 0.0
        %501 = vmatmul.mubr.f32.gmra.mxu0 %v423
        %v502 = vpop.f32.mrf.mxu0
        %v503 = vadd.f32 %v416, %v502
        %v504 = vpop.f32.mrf.mxu0
        %505 = vmatprep.mubr.f32.mxu0 0.0
        %506 = vmatmul.mubr.f32.gmra.mxu0 %v426
        %v507 = vpop.f32.mrf.mxu0
        %v508 = vadd.f32 %v416, %v507
        %v509 = vpop.f32.mrf.mxu0
        %510 = vmatprep.mubr.f32.mxu0 0.0
        %511 = vmatmul.mubr.f32.gmra.mxu0 %v429
        %v512 = vpop.f32.mrf.mxu0
        %v513 = vadd.f32 %v416, %v512
        %v514 = vpop.f32.mrf.mxu0
        %515 = vdwg.mxu0
        %v516 = vtanh.pop %v498
        %v517 = vtanh.pop %v503
        %v518 = vtanh.pop %v508
        %v519 = vtanh.pop %v513
        %v520 = vld [vmem:[%s4] sm:$0xff]
        %v521 = vld [vmem:[%s4 + $0x8] sm:$0xff]
        %v522 = vld [vmem:[%s4 + $0x10] sm:$0xff]
        %v523 = vld [vmem:[%s4 + $0x18] sm:$0xff]
        %v524 = vld [vmem:[%s5] sm:$0x1]
        %v526 = vlaneseq
        %v527 = vshrl.u32 %v526, 7
        %v528 = vsub.s32 0, %v527
        %v529 = vrot.slane %v524, %v528
        %v532 = vsel %vm418, %v516, 0
        %v535 = vsel %vm418, %v517, 0
        %v538 = vsel %vm418, %v518, 0
        %v541 = vsel %vm418, %v519, 0
        %543 = vmatprep.subr.mxu0 0.0
        %544 = vmatpush1.msra.mxu0 0.0
        %545 = vmatprep.subr.mxu0 0.0
        %546 = vmatpush1.msra.mxu0 0.0
        %547 = vmatprep.subr.mxu0 0.0
        %548 = vmatpush1.msra.mxu0 0.0
        %549 = vmatprep.subr.mxu0 0.0
        %550 = vmatpush1.msra.mxu0 0.0
        %551 = vmatprep.subr.mxu0 0.0
        %552 = vmatpush1.msra.mxu0 0.0
        %553 = vmatprep.subr.mxu0 0.0
        %554 = vmatpush1.msra.mxu0 0.0
        %555 = vmatprep.subr.mxu0 0.0
        %556 = vmatpush1.msra.mxu0 0.0
        %557 = vmatprep.subr.mxu0 0.0
        %558 = vmatpush1.msra.mxu0 0.0
        %559 = vmatprep.subr.mxu0 0.0
        %560 = vmatpush1.msra.mxu0 0.0
        %561 = vmatprep.subr.mxu0 0.0
        %562 = vmatpush1.msra.mxu0 0.0
        %563 = vmatprep.subr.mxu0 0.0
        %564 = vmatpush1.msra.mxu0 0.0
        %565 = vmatprep.subr.mxu0 0.0
        %566 = vmatpush1.msra.mxu0 0.0
        %567 = vmatprep.subr.mxu0 0.0
        %568 = vmatpush1.msra.mxu0 %v523
        %569 = vmatprep.subr.mxu0 0.0
        %570 = vmatpush1.msra.mxu0 %v522
        %571 = vmatprep.subr.mxu0 0.0
        %572 = vmatpush1.msra.mxu0 %v521
        %573 = vmatprep.subr.mxu0 0.0
        %574 = vmatpush1.msra.mxu0 %v520
        %575 = vmatprep.subr.mxu0 0.0
        %576 = vmatpush2.msra.mxu0 0.0
        %577 = vmatprep.subr.mxu0 0.0
        %578 = vmatpush2.msra.mxu0 0.0
        %579 = vmatprep.subr.mxu0 0.0
        %580 = vmatpush2.msra.mxu0 0.0
        %581 = vmatprep.subr.mxu0 0.0
        %582 = vmatpush2.msra.mxu0 0.0
        %583 = vmatprep.subr.mxu0 0.0
        %584 = vmatpush2.msra.mxu0 0.0
        %585 = vmatprep.subr.mxu0 0.0
        %586 = vmatpush2.msra.mxu0 0.0
        %587 = vmatprep.subr.mxu0 0.0
        %588 = vmatpush2.msra.mxu0 0.0
        %589 = vmatprep.subr.mxu0 0.0
        %590 = vmatpush2.msra.mxu0 0.0
        %591 = vmatprep.subr.mxu0 0.0
        %592 = vmatpush2.msra.mxu0 0.0
        %593 = vmatprep.subr.mxu0 0.0
        %594 = vmatpush2.msra.mxu0 0.0
        %595 = vmatprep.subr.mxu0 0.0
        %596 = vmatpush2.msra.mxu0 0.0
        %597 = vmatprep.subr.mxu0 0.0
        %598 = vmatpush2.msra.mxu0 0.0
        %599 = vmatprep.subr.mxu0 0.0
        %600 = vmatpush2.msra.mxu0 0.0
        %601 = vmatprep.subr.mxu0 0.0
        %602 = vmatpush2.msra.mxu0 0.0
        %603 = vmatprep.subr.mxu0 0.0
        %604 = vmatpush2.msra.mxu0 0.0
        %605 = vmatprep.subr.mxu0 0.0
        %606 = vmatpush2.msra.mxu0 0.0
        %607 = vmatprep.mubr.f32.mxu0 0.0
        %608 = vmatmul.mubr.f32.gmra.mxu0 %v532
        %v609 = vpop.f32.mrf.mxu0
        %v610 = vadd.f32 %v529, %v609
        %v611 = vpop.f32.mrf.mxu0
        %612 = vmatprep.mubr.f32.mxu0 0.0
        %613 = vmatmul.mubr.f32.gmra.mxu0 %v535
        %v614 = vpop.f32.mrf.mxu0
        %v615 = vadd.f32 %v529, %v614
        %v616 = vpop.f32.mrf.mxu0
        %617 = vmatprep.mubr.f32.mxu0 0.0
        %618 = vmatmul.mubr.f32.gmra.mxu0 %v538
        %v619 = vpop.f32.mrf.mxu0
        %v620 = vadd.f32 %v529, %v619
        %v621 = vpop.f32.mrf.mxu0
        %622 = vmatprep.mubr.f32.mxu0 0.0
        %623 = vmatmul.mubr.f32.gmra.mxu0 %v541
        %v624 = vpop.f32.mrf.mxu0
        %v625 = vadd.f32 %v529, %v624
        %v626 = vpop.f32.mrf.mxu0
        %627 = vdwg.mxu0
        %628 = vxpose.xlu0.b32.start [1/16] %v610, 128
        %629 = vxpose.xlu0.b32.cont [2/16] 0.0, 128
        %630 = vxpose.xlu0.b32.cont [3/16] 0.0, 128
        %631 = vxpose.xlu0.b32.cont [4/16] 0.0, 128
        %632 = vxpose.xlu0.b32.cont [5/16] 0.0, 128
        %633 = vxpose.xlu0.b32.cont [6/16] 0.0, 128
        %634 = vxpose.xlu0.b32.cont [7/16] 0.0, 128
        %635 = vxpose.xlu0.b32.cont [8/16] 0.0, 128
        %636 = vxpose.xlu0.b32.cont [9/16] 0.0, 128
        %637 = vxpose.xlu0.b32.cont [10/16] 0.0, 128
        %638 = vxpose.xlu0.b32.cont [11/16] 0.0, 128
        %639 = vxpose.xlu0.b32.cont [12/16] 0.0, 128
        %640 = vxpose.xlu0.b32.cont [13/16] 0.0, 128
        %641 = vxpose.xlu0.b32.cont [14/16] 0.0, 128
        %642 = vxpose.xlu0.b32.cont [15/16] 0.0, 128
        %643 = vxpose.xlu0.b32.end [16/16] 0.0, 128
        %v644 = vpop.trf.xlu0
        %v645 = vpop.trf.xlu0
        %v646 = vpop.trf.xlu0
        %v647 = vpop.trf.xlu0
        %v648 = vpop.trf.xlu0
        %v649 = vpop.trf.xlu0
        %v650 = vpop.trf.xlu0
        %v651 = vpop.trf.xlu0
        %v652 = vpop.trf.xlu0
        %v653 = vpop.trf.xlu0
        %v654 = vpop.trf.xlu0
        %v655 = vpop.trf.xlu0
        %v656 = vpop.trf.xlu0
        %v657 = vpop.trf.xlu0
        %v658 = vpop.trf.xlu0
        %v659 = vpop.trf.xlu0
        %660 = vxpose.xlu0.b32.start [1/16] %v615, 128
        %661 = vxpose.xlu0.b32.cont [2/16] 0.0, 128
        %662 = vxpose.xlu0.b32.cont [3/16] 0.0, 128
        %663 = vxpose.xlu0.b32.cont [4/16] 0.0, 128
        %664 = vxpose.xlu0.b32.cont [5/16] 0.0, 128
        %665 = vxpose.xlu0.b32.cont [6/16] 0.0, 128
        %666 = vxpose.xlu0.b32.cont [7/16] 0.0, 128
        %667 = vxpose.xlu0.b32.cont [8/16] 0.0, 128
        %668 = vxpose.xlu0.b32.cont [9/16] 0.0, 128
        %669 = vxpose.xlu0.b32.cont [10/16] 0.0, 128
        %670 = vxpose.xlu0.b32.cont [11/16] 0.0, 128
        %671 = vxpose.xlu0.b32.cont [12/16] 0.0, 128
        %672 = vxpose.xlu0.b32.cont [13/16] 0.0, 128
        %673 = vxpose.xlu0.b32.cont [14/16] 0.0, 128
        %674 = vxpose.xlu0.b32.cont [15/16] 0.0, 128
        %675 = vxpose.xlu0.b32.end [16/16] 0.0, 128
        %v676 = vpop.trf.xlu0
        %v677 = vpop.trf.xlu0
        %v678 = vpop.trf.xlu0
        %v679 = vpop.trf.xlu0
        %v680 = vpop.trf.xlu0
        %v681 = vpop.trf.xlu0
        %v682 = vpop.trf.xlu0
        %v683 = vpop.trf.xlu0
        %v684 = vpop.trf.xlu0
        %v685 = vpop.trf.xlu0
        %v686 = vpop.trf.xlu0
        %v687 = vpop.trf.xlu0
        %v688 = vpop.trf.xlu0
        %v689 = vpop.trf.xlu0
        %v690 = vpop.trf.xlu0
        %v691 = vpop.trf.xlu0
        %692 = vxpose.xlu0.b32.start [1/16] %v620, 128
        %693 = vxpose.xlu0.b32.cont [2/16] 0.0, 128
        %694 = vxpose.xlu0.b32.cont [3/16] 0.0, 128
        %695 = vxpose.xlu0.b32.cont [4/16] 0.0, 128
        %696 = vxpose.xlu0.b32.cont [5/16] 0.0, 128
        %697 = vxpose.xlu0.b32.cont [6/16] 0.0, 128
        %698 = vxpose.xlu0.b32.cont [7/16] 0.0, 128
        %699 = vxpose.xlu0.b32.cont [8/16] 0.0, 128
        %700 = vxpose.xlu0.b32.cont [9/16] 0.0, 128
        %701 = vxpose.xlu0.b32.cont [10/16] 0.0, 128
        %702 = vxpose.xlu0.b32.cont [11/16] 0.0, 128
        %703 = vxpose.xlu0.b32.cont [12/16] 0.0, 128
        %704 = vxpose.xlu0.b32.cont [13/16] 0.0, 128
        %705 = vxpose.xlu0.b32.cont [14/16] 0.0, 128
        %706 = vxpose.xlu0.b32.cont [15/16] 0.0, 128
        %707 = vxpose.xlu0.b32.end [16/16] 0.0, 128
        %v708 = vpop.trf.xlu0
        %v709 = vpop.trf.xlu0
        %v710 = vpop.trf.xlu0
        %v711 = vpop.trf.xlu0
        %v712 = vpop.trf.xlu0
        %v713 = vpop.trf.xlu0
        %v714 = vpop.trf.xlu0
        %v715 = vpop.trf.xlu0
        %v716 = vpop.trf.xlu0
        %v717 = vpop.trf.xlu0
        %v718 = vpop.trf.xlu0
        %v719 = vpop.trf.xlu0
        %v720 = vpop.trf.xlu0
        %v721 = vpop.trf.xlu0
        %v722 = vpop.trf.xlu0
        %v723 = vpop.trf.xlu0
        %724 = vxpose.xlu0.b32.start [1/16] %v625, 128
        %725 = vxpose.xlu0.b32.cont [2/16] 0.0, 128
        %726 = vxpose.xlu0.b32.cont [3/16] 0.0, 128
        %727 = vxpose.xlu0.b32.cont [4/16] 0.0, 128
        %728 = vxpose.xlu0.b32.cont [5/16] 0.0, 128
        %729 = vxpose.xlu0.b32.cont [6/16] 0.0, 128
        %730 = vxpose.xlu0.b32.cont [7/16] 0.0, 128
        %731 = vxpose.xlu0.b32.cont [8/16] 0.0, 128
        %732 = vxpose.xlu0.b32.cont [9/16] 0.0, 128
        %733 = vxpose.xlu0.b32.cont [10/16] 0.0, 128
        %734 = vxpose.xlu0.b32.cont [11/16] 0.0, 128
        %735 = vxpose.xlu0.b32.cont [12/16] 0.0, 128
        %736 = vxpose.xlu0.b32.cont [13/16] 0.0, 128
        %737 = vxpose.xlu0.b32.cont [14/16] 0.0, 128
        %738 = vxpose.xlu0.b32.cont [15/16] 0.0, 128
        %739 = vxpose.xlu0.b32.end [16/16] 0.0, 128
        %v740 = vpop.trf.xlu0
        %v741 = vpop.trf.xlu0
        %v742 = vpop.trf.xlu0
        %v743 = vpop.trf.xlu0
        %v744 = vpop.trf.xlu0
        %v745 = vpop.trf.xlu0
        %v746 = vpop.trf.xlu0
        %v747 = vpop.trf.xlu0
        %v748 = vpop.trf.xlu0
        %v749 = vpop.trf.xlu0
        %v750 = vpop.trf.xlu0
        %v751 = vpop.trf.xlu0
        %v752 = vpop.trf.xlu0
        %v753 = vpop.trf.xlu0
        %v754 = vpop.trf.xlu0
        %v755 = vpop.trf.xlu0
        %v756 = vld [vmem:[%s389] sm:$0x1]
        %v757 = vld [vmem:[%s389 + $0x1] sm:$0x1]
        %v758 = vld [vmem:[%s389 + $0x2] sm:$0x1]
        %v759 = vld [vmem:[%s389 + $0x3] sm:$0x1]
        %vm760 = vcmp.eq.f32.partialorder %v756, 0.0
        %vm761 = vcmp.eq.f32.partialorder %v757, 0.0
        %vm762 = vcmp.eq.f32.partialorder %v758, 0.0
        %vm763 = vcmp.eq.f32.partialorder %v759, 0.0
        %v764 = vsel %vm760, 1, 0
        %v765 = vsel %vm761, 1, 0
        %v766 = vsel %vm762, 1, 0
        %v767 = vsel %vm763, 1, 0
        %v768 = vlaneseq
        %v769 = vshrl.u32 %v768, 7
        %v770 = vsub.s32 0, %v769
        %v771 = vrot.slane %v764, %v770
        %v772 = vlaneseq
        %v773 = vshrl.u32 %v772, 7
        %v774 = vsub.s32 0, %v773
        %v775 = vrot.slane %v765, %v774
        %v776 = vlaneseq
        %v777 = vshrl.u32 %v776, 7
        %v778 = vsub.s32 0, %v777
        %v779 = vrot.slane %v766, %v778
        %v780 = vlaneseq
        %v781 = vshrl.u32 %v780, 7
        %v782 = vsub.s32 0, %v781
        %v783 = vrot.slane %v767, %v782
        %vm784 = vcmp.eq.s32.totalorder %v771, 1
        %vm785 = vcmp.eq.s32.totalorder %v775, 1
        %vm786 = vcmp.eq.s32.totalorder %v779, 1
        %vm787 = vcmp.eq.s32.totalorder %v783, 1
        %v788 = vsel %vm784, -10000.0, %v644
        %v789 = vsel %vm785, -10000.0, %v676
        %v790 = vsel %vm786, -10000.0, %v708
        %v791 = vsel %vm787, -10000.0, %v740
        %vm792 = vcmask 64512
        %v793 = vsel %vm792, %v788, -inf
        %794 = vmax.xlane.f32.xlu0 %v793
        %v795 = vpop.xlane.xlu0 %794
        %v796 = vsel %vm792, %v789, -inf
        %797 = vmax.xlane.f32.xlu0 %v796
        %v798 = vpop.xlane.xlu0 %797
        %v799 = vsel %vm792, %v790, -inf
        %800 = vmax.xlane.f32.xlu0 %v799
        %v801 = vpop.xlane.xlu0 %800
        %v802 = vsel %vm792, %v791, -inf
        %803 = vmax.xlane.f32.xlu0 %v802
        %v804 = vpop.xlane.xlu0 %803
        %v805 = vsub.f32 %v788, %v795
        %v806 = vsub.f32 %v789, %v798
        %v807 = vsub.f32 %v790, %v801
        %v808 = vsub.f32 %v791, %v804
        %v809 = vmul.f32 %v805, 1.442695
        %v810 = vpow.pop %v809
        %v811 = vmul.f32 %v806, 1.442695
        %v812 = vpow.pop %v811
        %v813 = vmul.f32 %v807, 1.442695
        %v814 = vpow.pop %v813
        %v815 = vmul.f32 %v808, 1.442695
        %v816 = vpow.pop %v815
        %v817 = vsel %vm792, %v810, 0.0
        %818 = vadd.xlane.f32.xlu0 %v817
        %v819 = vpop.xlane.xlu0 %818
        %v820 = vsel %vm792, %v812, 0.0
        %821 = vadd.xlane.f32.xlu0 %v820
        %v822 = vpop.xlane.xlu0 %821
        %v823 = vsel %vm792, %v814, 0.0
        %824 = vadd.xlane.f32.xlu0 %v823
        %v825 = vpop.xlane.xlu0 %824
        %v826 = vsel %vm792, %v816, 0.0
        %827 = vadd.xlane.f32.xlu0 %v826
        %v828 = vpop.xlane.xlu0 %827
        %v829 = vrcp.pop %v819
        %v830 = vrcp.pop %v822
        %v831 = vrcp.pop %v825
        %v832 = vrcp.pop %v828
        %v833 = vmul.f32 %v810, %v829
        %v834 = vmul.f32 %v812, %v830
        %v835 = vmul.f32 %v814, %v831
        %v836 = vmul.f32 %v816, %v832
        %v837 = vsel %vm784, 0.0, %v833
        %v838 = vsel %vm785, 0.0, %v834
        %v839 = vsel %vm786, 0.0, %v835
        %v840 = vsel %vm787, 0.0, %v836
        %841 = vst.msk [vmem:[%s401] sm:$0xff] %vm792, %v837
        %842 = vst.msk [vmem:[%s401 + $0x8] sm:$0xff] %vm792, %v838
        %843 = vst.msk [vmem:[%s401 + $0x10] sm:$0xff] %vm792, %v839
        %844 = vst.msk [vmem:[%s401 + $0x18] sm:$0xff] %vm792, %v840
        %v846 = vsel %vm792, %v837, 0
        %848 = vmatprep.subr.mxu0 0.0
        %849 = vmatpush1.msra.mxu0 0.0
        %850 = vmatprep.subr.mxu0 0.0
        %851 = vmatpush1.msra.mxu0 0.0
        %852 = vmatprep.subr.mxu0 0.0
        %853 = vmatpush1.msra.mxu0 0.0
        %854 = vmatprep.subr.mxu0 0.0
        %855 = vmatpush1.msra.mxu0 0.0
        %856 = vmatprep.subr.mxu0 0.0
        %857 = vmatpush1.msra.mxu0 0.0
        %858 = vmatprep.subr.mxu0 0.0
        %859 = vmatpush1.msra.mxu0 0.0
        %860 = vmatprep.subr.mxu0 0.0
        %861 = vmatpush1.msra.mxu0 0.0
        %862 = vmatprep.subr.mxu0 0.0
        %863 = vmatpush1.msra.mxu0 0.0
        %864 = vmatprep.subr.mxu0 0.0
        %865 = vmatpush1.msra.mxu0 0.0
        %866 = vmatprep.subr.mxu0 0.0
        %867 = vmatpush1.msra.mxu0 0.0
        %868 = vmatprep.subr.mxu0 0.0
        %869 = vmatpush1.msra.mxu0 0.0
        %870 = vmatprep.subr.mxu0 0.0
        %871 = vmatpush1.msra.mxu0 0.0
        %872 = vmatprep.subr.mxu0 0.0
        %873 = vmatpush1.msra.mxu0 0.0
        %874 = vmatprep.subr.mxu0 0.0
        %875 = vmatpush1.msra.mxu0 0.0
        %876 = vmatprep.subr.mxu0 0.0
        %877 = vmatpush1.msra.mxu0 0.0
        %878 = vmatprep.subr.mxu0 0.0
        %879 = vmatpush1.msra.mxu0 %v403
        %880 = vmatprep.subr.mxu0 0.0
        %881 = vmatpush2.msra.mxu0 0.0
        %882 = vmatprep.subr.mxu0 0.0
        %883 = vmatpush2.msra.mxu0 0.0
        %884 = vmatprep.subr.mxu0 0.0
        %885 = vmatpush2.msra.mxu0 0.0
        %886 = vmatprep.subr.mxu0 0.0
        %887 = vmatpush2.msra.mxu0 0.0
        %888 = vmatprep.subr.mxu0 0.0
        %889 = vmatpush2.msra.mxu0 0.0
        %890 = vmatprep.subr.mxu0 0.0
        %891 = vmatpush2.msra.mxu0 0.0
        %892 = vmatprep.subr.mxu0 0.0
        %893 = vmatpush2.msra.mxu0 0.0
        %894 = vmatprep.subr.mxu0 0.0
        %895 = vmatpush2.msra.mxu0 0.0
        %896 = vmatprep.subr.mxu0 0.0
        %897 = vmatpush2.msra.mxu0 0.0
        %898 = vmatprep.subr.mxu0 0.0
        %899 = vmatpush2.msra.mxu0 0.0
        %900 = vmatprep.subr.mxu0 0.0
        %901 = vmatpush2.msra.mxu0 0.0
        %902 = vmatprep.subr.mxu0 0.0
        %903 = vmatpush2.msra.mxu0 0.0
        %904 = vmatprep.subr.mxu0 0.0
        %905 = vmatpush2.msra.mxu0 0.0
        %906 = vmatprep.subr.mxu0 0.0
        %907 = vmatpush2.msra.mxu0 0.0
        %908 = vmatprep.subr.mxu0 0.0
        %909 = vmatpush2.msra.mxu0 0.0
        %910 = vmatprep.subr.mxu0 0.0
        %911 = vmatpush2.msra.mxu0 0.0
        %912 = vmatprep.mubr.f32.mxu0 0.0
        %913 = vmatmul.mubr.f32.gmra.mxu0 %v846
        %v914 = vpop.f32.mrf.mxu0
        %v915 = vadd.f32 0.0, %v914
        %v916 = vpop.f32.mrf.mxu0
        %917 = vdwg.mxu0
        %v919 = vsel %vm792, %v838, 0
        %921 = vmatprep.subr.mxu0 0.0
        %922 = vmatpush1.msra.mxu0 0.0
        %923 = vmatprep.subr.mxu0 0.0
        %924 = vmatpush1.msra.mxu0 0.0
        %925 = vmatprep.subr.mxu0 0.0
        %926 = vmatpush1.msra.mxu0 0.0
        %927 = vmatprep.subr.mxu0 0.0
        %928 = vmatpush1.msra.mxu0 0.0
        %929 = vmatprep.subr.mxu0 0.0
        %930 = vmatpush1.msra.mxu0 0.0
        %931 = vmatprep.subr.mxu0 0.0
        %932 = vmatpush1.msra.mxu0 0.0
        %933 = vmatprep.subr.mxu0 0.0
        %934 = vmatpush1.msra.mxu0 0.0
        %935 = vmatprep.subr.mxu0 0.0
        %936 = vmatpush1.msra.mxu0 0.0
        %937 = vmatprep.subr.mxu0 0.0
        %938 = vmatpush1.msra.mxu0 0.0
        %939 = vmatprep.subr.mxu0 0.0
        %940 = vmatpush1.msra.mxu0 0.0
        %941 = vmatprep.subr.mxu0 0.0
        %942 = vmatpush1.msra.mxu0 0.0
        %943 = vmatprep.subr.mxu0 0.0
        %944 = vmatpush1.msra.mxu0 0.0
        %945 = vmatprep.subr.mxu0 0.0
        %946 = vmatpush1.msra.mxu0 0.0
        %947 = vmatprep.subr.mxu0 0.0
        %948 = vmatpush1.msra.mxu0 0.0
        %949 = vmatprep.subr.mxu0 0.0
        %950 = vmatpush1.msra.mxu0 0.0
        %951 = vmatprep.subr.mxu0 0.0
        %952 = vmatpush1.msra.mxu0 %v404
        %953 = vmatprep.subr.mxu0 0.0
        %954 = vmatpush2.msra.mxu0 0.0
        %955 = vmatprep.subr.mxu0 0.0
        %956 = vmatpush2.msra.mxu0 0.0
        %957 = vmatprep.subr.mxu0 0.0
        %958 = vmatpush2.msra.mxu0 0.0
        %959 = vmatprep.subr.mxu0 0.0
        %960 = vmatpush2.msra.mxu0 0.0
        %961 = vmatprep.subr.mxu0 0.0
        %962 = vmatpush2.msra.mxu0 0.0
        %963 = vmatprep.subr.mxu0 0.0
        %964 = vmatpush2.msra.mxu0 0.0
        %965 = vmatprep.subr.mxu0 0.0
        %966 = vmatpush2.msra.mxu0 0.0
        %967 = vmatprep.subr.mxu0 0.0
        %968 = vmatpush2.msra.mxu0 0.0
        %969 = vmatprep.subr.mxu0 0.0
        %970 = vmatpush2.msra.mxu0 0.0
        %971 = vmatprep.subr.mxu0 0.0
        %972 = vmatpush2.msra.mxu0 0.0
        %973 = vmatprep.subr.mxu0 0.0
        %974 = vmatpush2.msra.mxu0 0.0
        %975 = vmatprep.subr.mxu0 0.0
        %976 = vmatpush2.msra.mxu0 0.0
        %977 = vmatprep.subr.mxu0 0.0
        %978 = vmatpush2.msra.mxu0 0.0
        %979 = vmatprep.subr.mxu0 0.0
        %980 = vmatpush2.msra.mxu0 0.0
        %981 = vmatprep.subr.mxu0 0.0
        %982 = vmatpush2.msra.mxu0 0.0
        %983 = vmatprep.subr.mxu0 0.0
        %984 = vmatpush2.msra.mxu0 0.0
        %985 = vmatprep.mubr.f32.mxu0 0.0
        %986 = vmatmul.mubr.f32.gmra.mxu0 %v919
        %v987 = vpop.f32.mrf.mxu0
        %v988 = vadd.f32 0.0, %v987
        %v989 = vpop.f32.mrf.mxu0
        %990 = vdwg.mxu0
        %v992 = vsel %vm792, %v839, 0
        %994 = vmatprep.subr.mxu0 0.0
        %995 = vmatpush1.msra.mxu0 0.0
        %996 = vmatprep.subr.mxu0 0.0
        %997 = vmatpush1.msra.mxu0 0.0
        %998 = vmatprep.subr.mxu0 0.0
        %999 = vmatpush1.msra.mxu0 0.0
        %1000 = vmatprep.subr.mxu0 0.0
        %1001 = vmatpush1.msra.mxu0 0.0
        %1002 = vmatprep.subr.mxu0 0.0
        %1003 = vmatpush1.msra.mxu0 0.0
        %1004 = vmatprep.subr.mxu0 0.0
        %1005 = vmatpush1.msra.mxu0 0.0
        %1006 = vmatprep.subr.mxu0 0.0
        %1007 = vmatpush1.msra.mxu0 0.0
        %1008 = vmatprep.subr.mxu0 0.0
        %1009 = vmatpush1.msra.mxu0 0.0
        %1010 = vmatprep.subr.mxu0 0.0
        %1011 = vmatpush1.msra.mxu0 0.0
        %1012 = vmatprep.subr.mxu0 0.0
        %1013 = vmatpush1.msra.mxu0 0.0
        %1014 = vmatprep.subr.mxu0 0.0
        %1015 = vmatpush1.msra.mxu0 0.0
        %1016 = vmatprep.subr.mxu0 0.0
        %1017 = vmatpush1.msra.mxu0 0.0
        %1018 = vmatprep.subr.mxu0 0.0
        %1019 = vmatpush1.msra.mxu0 0.0
        %1020 = vmatprep.subr.mxu0 0.0
        %1021 = vmatpush1.msra.mxu0 0.0
        %1022 = vmatprep.subr.mxu0 0.0
        %1023 = vmatpush1.msra.mxu0 0.0
        %1024 = vmatprep.subr.mxu0 0.0
        %1025 = vmatpush1.msra.mxu0 %v405
        %1026 = vmatprep.subr.mxu0 0.0
        %1027 = vmatpush2.msra.mxu0 0.0
        %1028 = vmatprep.subr.mxu0 0.0
        %1029 = vmatpush2.msra.mxu0 0.0
        %1030 = vmatprep.subr.mxu0 0.0
        %1031 = vmatpush2.msra.mxu0 0.0
        %1032 = vmatprep.subr.mxu0 0.0
        %1033 = vmatpush2.msra.mxu0 0.0
        %1034 = vmatprep.subr.mxu0 0.0
        %1035 = vmatpush2.msra.mxu0 0.0
        %1036 = vmatprep.subr.mxu0 0.0
        %1037 = vmatpush2.msra.mxu0 0.0
        %1038 = vmatprep.subr.mxu0 0.0
        %1039 = vmatpush2.msra.mxu0 0.0
        %1040 = vmatprep.subr.mxu0 0.0
        %1041 = vmatpush2.msra.mxu0 0.0
        %1042 = vmatprep.subr.mxu0 0.0
        %1043 = vmatpush2.msra.mxu0 0.0
        %1044 = vmatprep.subr.mxu0 0.0
        %1045 = vmatpush2.msra.mxu0 0.0
        %1046 = vmatprep.subr.mxu0 0.0
        %1047 = vmatpush2.msra.mxu0 0.0
        %1048 = vmatprep.subr.mxu0 0.0
        %1049 = vmatpush2.msra.mxu0 0.0
        %1050 = vmatprep.subr.mxu0 0.0
        %1051 = vmatpush2.msra.mxu0 0.0
        %1052 = vmatprep.subr.mxu0 0.0
        %1053 = vmatpush2.msra.mxu0 0.0
        %1054 = vmatprep.subr.mxu0 0.0
        %1055 = vmatpush2.msra.mxu0 0.0
        %1056 = vmatprep.subr.mxu0 0.0
        %1057 = vmatpush2.msra.mxu0 0.0
        %1058 = vmatprep.mubr.f32.mxu0 0.0
        %1059 = vmatmul.mubr.f32.gmra.mxu0 %v992
        %v1060 = vpop.f32.mrf.mxu0
        %v1061 = vadd.f32 0.0, %v1060
        %v1062 = vpop.f32.mrf.mxu0
        %1063 = vdwg.mxu0
        %v1065 = vsel %vm792, %v840, 0
        %1067 = vmatprep.subr.mxu0 0.0
        %1068 = vmatpush1.msra.mxu0 0.0
        %1069 = vmatprep.subr.mxu0 0.0
        %1070 = vmatpush1.msra.mxu0 0.0
        %1071 = vmatprep.subr.mxu0 0.0
        %1072 = vmatpush1.msra.mxu0 0.0
        %1073 = vmatprep.subr.mxu0 0.0
        %1074 = vmatpush1.msra.mxu0 0.0
        %1075 = vmatprep.subr.mxu0 0.0
        %1076 = vmatpush1.msra.mxu0 0.0
        %1077 = vmatprep.subr.mxu0 0.0
        %1078 = vmatpush1.msra.mxu0 0.0
        %1079 = vmatprep.subr.mxu0 0.0
        %1080 = vmatpush1.msra.mxu0 0.0
        %1081 = vmatprep.subr.mxu0 0.0
        %1082 = vmatpush1.msra.mxu0 0.0
        %1083 = vmatprep.subr.mxu0 0.0
        %1084 = vmatpush1.msra.mxu0 0.0
        %1085 = vmatprep.subr.mxu0 0.0
        %1086 = vmatpush1.msra.mxu0 0.0
        %1087 = vmatprep.subr.mxu0 0.0
        %1088 = vmatpush1.msra.mxu0 0.0
        %1089 = vmatprep.subr.mxu0 0.0
        %1090 = vmatpush1.msra.mxu0 0.0
        %1091 = vmatprep.subr.mxu0 0.0
        %1092 = vmatpush1.msra.mxu0 0.0
        %1093 = vmatprep.subr.mxu0 0.0
        %1094 = vmatpush1.msra.mxu0 0.0
        %1095 = vmatprep.subr.mxu0 0.0
        %1096 = vmatpush1.msra.mxu0 0.0
        %1097 = vmatprep.subr.mxu0 0.0
        %1098 = vmatpush1.msra.mxu0 %v406
        %1099 = vmatprep.subr.mxu0 0.0
        %1100 = vmatpush2.msra.mxu0 0.0
        %1101 = vmatprep.subr.mxu0 0.0
        %1102 = vmatpush2.msra.mxu0 0.0
        %1103 = vmatprep.subr.mxu0 0.0
        %1104 = vmatpush2.msra.mxu0 0.0
        %1105 = vmatprep.subr.mxu0 0.0
        %1106 = vmatpush2.msra.mxu0 0.0
        %1107 = vmatprep.subr.mxu0 0.0
        %1108 = vmatpush2.msra.mxu0 0.0
        %1109 = vmatprep.subr.mxu0 0.0
        %1110 = vmatpush2.msra.mxu0 0.0
        %1111 = vmatprep.subr.mxu0 0.0
        %1112 = vmatpush2.msra.mxu0 0.0
        %1113 = vmatprep.subr.mxu0 0.0
        %1114 = vmatpush2.msra.mxu0 0.0
        %1115 = vmatprep.subr.mxu0 0.0
        %1116 = vmatpush2.msra.mxu0 0.0
        %1117 = vmatprep.subr.mxu0 0.0
        %1118 = vmatpush2.msra.mxu0 0.0
        %1119 = vmatprep.subr.mxu0 0.0
        %1120 = vmatpush2.msra.mxu0 0.0
        %1121 = vmatprep.subr.mxu0 0.0
        %1122 = vmatpush2.msra.mxu0 0.0
        %1123 = vmatprep.subr.mxu0 0.0
        %1124 = vmatpush2.msra.mxu0 0.0
        %1125 = vmatprep.subr.mxu0 0.0
        %1126 = vmatpush2.msra.mxu0 0.0
        %1127 = vmatprep.subr.mxu0 0.0
        %1128 = vmatpush2.msra.mxu0 0.0
        %1129 = vmatprep.subr.mxu0 0.0
        %1130 = vmatpush2.msra.mxu0 0.0
        %1131 = vmatprep.mubr.f32.mxu0 0.0
        %1132 = vmatmul.mubr.f32.gmra.mxu0 %v1065
        %v1133 = vpop.f32.mrf.mxu0
        %v1134 = vadd.f32 0.0, %v1133
        %v1135 = vpop.f32.mrf.mxu0
        %1136 = vdwg.mxu0
        %v1137 = vld [vmem:[#allocation4] sm:$0xff]
        %v1138 = vld [vmem:[#allocation4 + $0x8] sm:$0xff]
        %v1139 = vld [vmem:[#allocation4 + $0x10] sm:$0xff]
        %v1140 = vld [vmem:[#allocation4 + $0x18] sm:$0xff]
        %v1141 = vld [vmem:[%s7] sm:$0x1]
        %v1143 = vlaneseq
        %v1144 = vshrl.u32 %v1143, 7
        %v1145 = vsub.s32 0, %v1144
        %v1146 = vrot.slane %v1141, %v1145
        %v1149 = vsel %vm418, %v915, 0
        %v1152 = vsel %vm418, %v988, 0
        %v1155 = vsel %vm418, %v1061, 0
        %v1158 = vsel %vm418, %v1134, 0
        %1160 = vmatprep.subr.mxu0 0.0
        %1161 = vmatpush1.msra.mxu0 0.0
        %1162 = vmatprep.subr.mxu0 0.0
        %1163 = vmatpush1.msra.mxu0 0.0
        %1164 = vmatprep.subr.mxu0 0.0
        %1165 = vmatpush1.msra.mxu0 0.0
        %1166 = vmatprep.subr.mxu0 0.0
        %1167 = vmatpush1.msra.mxu0 0.0
        %1168 = vmatprep.subr.mxu0 0.0
        %1169 = vmatpush1.msra.mxu0 0.0
        %1170 = vmatprep.subr.mxu0 0.0
        %1171 = vmatpush1.msra.mxu0 0.0
        %1172 = vmatprep.subr.mxu0 0.0
        %1173 = vmatpush1.msra.mxu0 0.0
        %1174 = vmatprep.subr.mxu0 0.0
        %1175 = vmatpush1.msra.mxu0 0.0
        %1176 = vmatprep.subr.mxu0 0.0
        %1177 = vmatpush1.msra.mxu0 0.0
        %1178 = vmatprep.subr.mxu0 0.0
        %1179 = vmatpush1.msra.mxu0 0.0
        %1180 = vmatprep.subr.mxu0 0.0
        %1181 = vmatpush1.msra.mxu0 0.0
        %1182 = vmatprep.subr.mxu0 0.0
        %1183 = vmatpush1.msra.mxu0 0.0
        %1184 = vmatprep.subr.mxu0 0.0
        %1185 = vmatpush1.msra.mxu0 %v1140
        %1186 = vmatprep.subr.mxu0 0.0
        %1187 = vmatpush1.msra.mxu0 %v1139
        %1188 = vmatprep.subr.mxu0 0.0
        %1189 = vmatpush1.msra.mxu0 %v1138
        %1190 = vmatprep.subr.mxu0 0.0
        %1191 = vmatpush1.msra.mxu0 %v1137
        %1192 = vmatprep.subr.mxu0 0.0
        %1193 = vmatpush2.msra.mxu0 0.0
        %1194 = vmatprep.subr.mxu0 0.0
        %1195 = vmatpush2.msra.mxu0 0.0
        %1196 = vmatprep.subr.mxu0 0.0
        %1197 = vmatpush2.msra.mxu0 0.0
        %1198 = vmatprep.subr.mxu0 0.0
        %1199 = vmatpush2.msra.mxu0 0.0
        %1200 = vmatprep.subr.mxu0 0.0
        %1201 = vmatpush2.msra.mxu0 0.0
        %1202 = vmatprep.subr.mxu0 0.0
        %1203 = vmatpush2.msra.mxu0 0.0
        %1204 = vmatprep.subr.mxu0 0.0
        %1205 = vmatpush2.msra.mxu0 0.0
        %1206 = vmatprep.subr.mxu0 0.0
        %1207 = vmatpush2.msra.mxu0 0.0
        %1208 = vmatprep.subr.mxu0 0.0
        %1209 = vmatpush2.msra.mxu0 0.0
        %1210 = vmatprep.subr.mxu0 0.0
        %1211 = vmatpush2.msra.mxu0 0.0
        %1212 = vmatprep.subr.mxu0 0.0
        %1213 = vmatpush2.msra.mxu0 0.0
        %1214 = vmatprep.subr.mxu0 0.0
        %1215 = vmatpush2.msra.mxu0 0.0
        %1216 = vmatprep.subr.mxu0 0.0
        %1217 = vmatpush2.msra.mxu0 0.0
        %1218 = vmatprep.subr.mxu0 0.0
        %1219 = vmatpush2.msra.mxu0 0.0
        %1220 = vmatprep.subr.mxu0 0.0
        %1221 = vmatpush2.msra.mxu0 0.0
        %1222 = vmatprep.subr.mxu0 0.0
        %1223 = vmatpush2.msra.mxu0 0.0
        %1224 = vmatprep.mubr.f32.mxu0 0.0
        %1225 = vmatmul.mubr.f32.gmra.mxu0 %v1149
        %v1226 = vpop.f32.mrf.mxu0
        %v1227 = vadd.f32 %v1146, %v1226
        %v1228 = vpop.f32.mrf.mxu0
        %1229 = vmatprep.mubr.f32.mxu0 0.0
        %1230 = vmatmul.mubr.f32.gmra.mxu0 %v1152
        %v1231 = vpop.f32.mrf.mxu0
        %v1232 = vadd.f32 %v1146, %v1231
        %v1233 = vpop.f32.mrf.mxu0
        %1234 = vmatprep.mubr.f32.mxu0 0.0
        %1235 = vmatmul.mubr.f32.gmra.mxu0 %v1155
        %v1236 = vpop.f32.mrf.mxu0
        %v1237 = vadd.f32 %v1146, %v1236
        %v1238 = vpop.f32.mrf.mxu0
        %1239 = vmatprep.mubr.f32.mxu0 0.0
        %1240 = vmatmul.mubr.f32.gmra.mxu0 %v1158
        %v1241 = vpop.f32.mrf.mxu0
        %v1242 = vadd.f32 %v1146, %v1241
        %v1243 = vpop.f32.mrf.mxu0
        %1244 = vdwg.mxu0
        %1245 = vst.msk [vmem:[%s395] sm:$0xff] %vm418, %v1227
        %1246 = vst.msk [vmem:[%s395 + $0x8] sm:$0xff] %vm418, %v1232
        %1247 = vst.msk [vmem:[%s395 + $0x10] sm:$0xff] %vm418, %v1237
        %1248 = vst.msk [vmem:[%s395 + $0x18] sm:$0xff] %vm418, %v1242
        %s1249 = smul.u32 4, %s25
        %p1250 = scmp.lt.s32.totalorder %s1249, 7
        %s1251 = scalar_select %p1250, %s1249, 7
        %s1252 = smul.addr %s1251, 8
        %s1253 = scalar_lea.vmem %s8, %s1252
        %s1254 = smul.u32 4, %s25
        %p1255 = scmp.lt.s32.totalorder %s1254, 7
        %s1256 = scalar_select %p1255, %s1254, 7
        %s1257 = smul.addr %s1256, 8
        %s1258 = scalar_lea.vmem %s9, %s1257
        // Predicated region
        $region61: #{tpu_custom_call.1} parent=51 // pred_check
          %p1259 = pneg %p221
        $region62: #{tpu_custom_call.1} parent=51 // pred_check_branch
          %1261 = sbr.rel (%p1259) target = $region64
        $region63: #{tpu_custom_call.1} parent=51 // pred_region
          %s1262 = smul.u32 4, %s25
        $region64: #{tpu_custom_call.1} parent=51 // pred_fallthru
          _
        // Predicated region
        $region65: #{tpu_custom_call.1} parent=51 // pred_check
          %p1263 = pneg %p247
        $region66: #{tpu_custom_call.1} parent=51 // pred_check_branch
          %1265 = sbr.rel (%p1263) target = $region68
        $region67: #{tpu_custom_call.1} parent=51 // pred_region
          %s1266 = smul.u32 4, %s25
        $region68: #{tpu_custom_call.1} parent=51 // pred_fallthru
          _
      $region52: #{tpu_custom_call.1} parent=5 // pred_fallthru
        _
      %p1267 = scmp.le.s32.totalorder 2, %s20
      // Predicated region
      $region69: #{tpu_custom_call.1} parent=5 // pred_check
        %p1268 = pneg %p1267
      $region70: #{tpu_custom_call.1} parent=5 // pred_check_branch
        %1270 = sbr.rel (%p1268) target = $region72
      $region71: #{tpu_custom_call.1} parent=5 // pred_region
        %s1271 = ssub.s32 %s20, 2
        // Predicated region
        $region73: #{tpu_custom_call.1} parent=71 // pred_check
          %p1272 = pneg %p227
        $region74: #{tpu_custom_call.1} parent=71 // pred_check_branch
          %1274 = sbr.rel (%p1272) target = $region76
        $region75: #{tpu_custom_call.1} parent=71 // pred_region
          %s1275 = smul.u32 4, %s26
          %p1276 = scmp.lt.s32.totalorder %s1275, 7
          %s1277 = scalar_select %p1276, %s1275, 7
          %s1278 = smul.addr %s1277, 8
          %s1279 = scalar_lea.vmem %s8, %s1278
        $region76: #{tpu_custom_call.1} parent=71 // pred_fallthru
          _
        // Predicated region
        $region77: #{tpu_custom_call.1} parent=71 // pred_check
          %p1280 = pneg %p253
        $region78: #{tpu_custom_call.1} parent=71 // pred_check_branch
          %1282 = sbr.rel (%p1280) target = $region80
        $region79: #{tpu_custom_call.1} parent=71 // pred_region
          %s1283 = smul.u32 4, %s26
          %p1284 = scmp.lt.s32.totalorder %s1283, 7
          %s1285 = scalar_select %p1284, %s1283, 7
          %s1286 = smul.addr %s1285, 8
          %s1287 = scalar_lea.vmem %s9, %s1286
        $region80: #{tpu_custom_call.1} parent=71 // pred_fallthru
          _
      $region72: #{tpu_custom_call.1} parent=5 // pred_fallthru
        _
    $region6: #{tpu_custom_call.1} parent=1 // loop_footer
      %s24 = sadd.s32 1, %s20
    $region7: #{tpu_custom_call.1} parent=1 // loop_footer_branch
      %19 = sbr.rel target = $region3
    $region8: #{tpu_custom_call.1} parent=1 // loop_exit
      _
    %1288 = vsyncpa [#allocation3], 1
    %s1289 = scalar_lea.sflag [#allocation3], 1
    %1290 = vsyncpa %s1289, 1
    %1291 = vsyncpa [#allocation5], 1

</llo_original>
